<compile_context>
chip_gen: v7x
topology: tpu7x:2x2x1
jax: 0.10.0
libtpu: 0.0.40
codegen_flags: <defaults>
</compile_context>

<pallas_src>
import functools

import jax
import jax.numpy as jnp
from jax.experimental import pallas as pl
from jax.experimental.pallas import tpu as pltpu


_P2_TARGET_ROWS = 2048          # pass-2 tile target (rows of Cout_pad), per review
_VMEM_LIMIT = 48 * 1024 * 1024  # safe on v5e/v6e/v7x (64 MiB physical on v7x)


def _round_up(x, m):
    return (x + m - 1) // m * m


def _largest_divisor_leq(n, cap):
    cap = max(1, min(n, cap))
    for d in range(cap, 0, -1):
        if n % d == 0:
            return d
    return 1


def _conv_stats_kernel(x_ref, w_ref, y_ref, stats_ref, *, w_cols, out_rows):
    """One image: 3x3 conv as 3 row-shifted MXU dots + centered per-channel stats.

    x_ref:    [(H+2)*W, K3p]   kw-taps pre-gathered, padded image rows included
    w_ref:    [3, K3p, Cp]     per-kh weight matrices
    y_ref:    [H*W, Cp]        raw conv output (pre-BN), compute dtype
    stats_ref:[1, 2, Cp]       row 0 = per-image mean, row 1 = centered SSQ (f32)
    """
    acc = None
    for kh in range(3):  # static, unrolled; offsets kh*W are sublane-aligned (W%8==0)
        slab = x_ref[pl.ds(kh * w_cols, out_rows), :]
        d = jnp.dot(slab, w_ref[kh], preferred_element_type=jnp.float32)
        acc = d if acc is None else acc + d
    y_ref[...] = acc.astype(y_ref.dtype)
    mean = jnp.sum(acc, axis=0, keepdims=True) * (1.0 / out_rows)   # [1, Cp]
    d0 = acc - mean
    m2 = jnp.sum(d0 * d0, axis=0, keepdims=True)                    # [1, Cp]
    stats_ref[...] = jnp.concatenate([mean, m2], axis=0)[None]


def _bn_pool_relu_kernel(y_ref, scale_ref, shift_ref, out_ref, *, cp, pool):
    """Train-mode BN affine, optional in-kernel 2x2 max-pool, ReLU.

    pool=True : y_ref [RT, 2, Wo, 2*Cp]  (dh on axis 1, dw folded into lanes)
                out_ref [RT, Wo, Cp]
    pool=False: y_ref [TM, Cp], out_ref [TM, Cp]
    """
    scale = scale_ref[...]   # [1, Cp] -- used via implicit broadcast (no tm x Cp temp)
    shift = shift_ref[...]
    if pool:
        v = y_ref[...]
        a = v[..., :cp].astype(jnp.float32) * scale + shift   # dw = 0
        b = v[..., cp:].astype(jnp.float32) * scale + shift   # dw = 1
        m = jnp.maximum(a, b)                                 # [RT, 2, Wo, Cp]
        m = jnp.maximum(m[:, 0], m[:, 1])                     # [RT, Wo, Cp]
    else:
        m = y_ref[...].astype(jnp.float32) * scale + shift    # [TM, Cp]
    out_ref[...] = jnp.maximum(m, 0.0).astype(out_ref.dtype)


@functools.partial(jax.jit, static_argnames=("pool", "eps", "compute_dtype"))
def conv_bn_relu_pool(x_nchw, w_oihw, gamma, beta, *, pool=False, eps=1e-5,
                      compute_dtype=jnp.bfloat16):
    """Forward pass of ConvBNReluPool. Input/output are NCHW float32."""
    x_nchw = x_nchw.astype(jnp.float32)
    N, Cin, H, W = x_nchw.shape
    Cout = w_oihw.shape[0]
    assert W % 8 == 0, "sublane-aligned row tiles need W to be a multiple of 8"
    if pool:
        assert H % 2 == 0 and W % 2 == 0

    K3 = 3 * Cin
    K3p = _round_up(K3, 8)         # sublane quantum only; lanes pad for free in vregs
    Cp = _round_up(Cout, 128)      # lane-dense stores + dense MXU N dimension

    # ---- wrapper glue (fused under jit): NHWC, pad, gather the 3 kw taps ----
    x = jnp.transpose(x_nchw, (0, 2, 3, 1))                  # [N,H,W,Cin]
    xp = jnp.pad(x, ((0, 0), (1, 1), (1, 1), (0, 0)))        # [N,H+2,W+2,Cin]
    xw = jnp.concatenate([xp[:, :, kw:kw + W, :] for kw in range(3)], axis=-1)
    xf = xw.reshape(N * (H + 2) * W, K3)                     # [N*(H+2)*W, 3Cin]
    if K3p != K3:
        xf = jnp.pad(xf, ((0, 0), (0, K3p - K3)))
    xf = xf.astype(compute_dtype)

    # weights: [Cout,Cin,3,3] -> [kh, kw*Cin + c, Cout_pad] (matches xw lanes)
    w3 = jnp.transpose(w_oihw, (2, 3, 1, 0)).reshape(3, K3, Cout)
    w3 = jnp.pad(w3, ((0, 0), (0, K3p - K3), (0, Cp - Cout))).astype(compute_dtype)

    gamma_p = jnp.pad(gamma.astype(jnp.float32), (0, Cp - Cout))
    beta_p = jnp.pad(beta.astype(jnp.float32), (0, Cp - Cout))

    # ---- pass 1: conv on the MXU + per-image centered BN partials -----------
    rows_in = (H + 2) * W
    rows_out = H * W
    y_flat, stats = pl.pallas_call(
        functools.partial(_conv_stats_kernel, w_cols=W, out_rows=rows_out),
        out_shape=(jax.ShapeDtypeStruct((N * rows_out, Cp), compute_dtype),
                   jax.ShapeDtypeStruct((N, 2, Cp), jnp.float32)),
        grid=(N,),
        in_specs=[
            pl.BlockSpec((rows_in, K3p), lambda n: (n, 0)),
            pl.BlockSpec((3, K3p, Cp), lambda n: (0, 0, 0)),
        ],
        out_specs=[
            pl.BlockSpec((rows_out, Cp), lambda n: (n, 0)),
            pl.BlockSpec((1, 2, Cp), lambda n: (n, 0, 0)),
        ],
        compiler_params=pltpu.CompilerParams(
            dimension_semantics=("parallel",),
            vmem_limit_bytes=_VMEM_LIMIT),
    )(xf, w3)

    # ---- BN scale/shift: combine per-image stats (Chan's parallel variance) --
    mean_i = stats[:, 0, :]                     # [N, Cp]
    m2_i = stats[:, 1, :]                       # [N, Cp]
    cnt = jnp.float32(H * W)
    mean = jnp.mean(mean_i, axis=0)             # global per-channel mean
    m2 = jnp.sum(m2_i, axis=0) + cnt * jnp.sum(jnp.square(mean_i - mean), axis=0)
    var = m2 / (cnt * N)                        # biased variance (matches BN norm)
    inv_std = jax.lax.rsqrt(var + eps)
    scale = (gamma_p * inv_std).reshape(1, Cp)
    shift = (beta_p - mean * gamma_p * inv_std).reshape(1, Cp)

    # ---- pass 2: affine + (in-kernel) maxpool + relu, no regroup / no pad ----
    if pool:
        Ho, Wo = H // 2, W // 2
        # Pure row-major reinterpretation of y: [N*Ho, dh=2, Wo, dw*Cp + c].
        # Under jit this is a bitcast -- no HBM copy.
        y4 = y_flat.reshape(N * Ho, 2, Wo, 2 * Cp)
        rt = _largest_divisor_leq(Ho, max(1, _P2_TARGET_ROWS // (2 * W)))
        out2 = pl.pallas_call(
            functools.partial(_bn_pool_relu_kernel, cp=Cp, pool=True),
            out_shape=jax.ShapeDtypeStruct((N * Ho, Wo, Cp), compute_dtype),
            grid=((N * Ho) // rt,),
            in_specs=[
                pl.BlockSpec((rt, 2, Wo, 2 * Cp), lambda i: (i, 0, 0, 0)),
                pl.BlockSpec((1, Cp), lambda i: (0, 0)),
                pl.BlockSpec((1, Cp), lambda i: (0, 0)),
            ],
            out_specs=pl.BlockSpec((rt, Wo, Cp), lambda i: (i, 0, 0)),
            compiler_params=pltpu.CompilerParams(
                dimension_semantics=("parallel",),
                vmem_limit_bytes=_VMEM_LIMIT),
        )(y4, scale, shift)
        out = out2[:, :, :Cout].reshape(N, Ho, Wo, Cout)
    else:
        rt = _largest_divisor_leq(H, max(1, _P2_TARGET_ROWS // W))
        tm = rt * W                              # divides N*H*W -> no tail padding
        out2 = pl.pallas_call(
            functools.partial(_bn_pool_relu_kernel, cp=Cp, pool=False),
            out_shape=jax.ShapeDtypeStruct((N * H * W, Cp), compute_dtype),
            grid=((N * H * W) // tm,),
            in_specs=[
                pl.BlockSpec((tm, Cp), lambda i: (i, 0)),
                pl.BlockSpec((1, Cp), lambda i: (0, 0)),
                pl.BlockSpec((1, Cp), lambda i: (0, 0)),
            ],
            out_specs=pl.BlockSpec((tm, Cp), lambda i: (i, 0)),
            compiler_params=pltpu.CompilerParams(
                dimension_semantics=("parallel",),
                vmem_limit_bytes=_VMEM_LIMIT),
        )(y_flat, scale, shift)
        out = out2[:, :Cout].reshape(N, H, W, Cout)

    # Final NCHW relayout + f32 cast on the (small) pooled output only.
    return jnp.transpose(out, (0, 3, 1, 2)).astype(jnp.float32)


def _reference(x_nchw, w_oihw, gamma, beta, *, pool, eps=1e-5):
    """Pure-JAX reference matching PyTorch semantics (train-mode BN)."""
    y = jax.lax.conv_general_dilated(
        x_nchw, w_oihw, window_strides=(1, 1), padding=((1, 1), (1, 1)),
        dimension_numbers=("NCHW", "OIHW", "NCHW"))
    mean = jnp.mean(y, axis=(0, 2, 3), keepdims=True)
    var = jnp.var(y, axis=(0, 2, 3), keepdims=True)
    y = (y - mean) * jax.lax.rsqrt(var + eps)
    y = y * gamma.reshape(1, -1, 1, 1) + beta.reshape(1, -1, 1, 1)
    if pool:
        N, C, H, W = y.shape
        y = y.reshape(N, C, H // 2, 2, W // 2, 2).max(axis=(3, 5))
    return jax.nn.relu(y)


if __name__ == "__main__":
    key = jax.random.PRNGKey(0)
    kx, kw = jax.random.split(key)

    N, Cin, Cout, H, W = 2, 4, 8, 16, 16
    x = jax.random.normal(kx, (N, Cin, H, W), dtype=jnp.float32)
    # Conv2d weight [Cout, Cin, 3, 3] (no bias); non-trivial BN affine params.
    w = jax.random.normal(kw, (Cout, Cin, 3, 3), dtype=jnp.float32) * (2.0 / (Cin * 9)) ** 0.5
    gamma = 1.0 + 0.1 * jnp.arange(Cout, dtype=jnp.float32) / Cout
    beta = 0.05 * jnp.arange(Cout, dtype=jnp.float32)

    ok = True
    for pool in (False, True):
        ref = jax.block_until_ready(_reference(x, w, gamma, beta, pool=pool))
        for dtype, tol in ((jnp.float32, 1e-3), (jnp.bfloat16, 5e-2)):
            out = conv_bn_relu_pool(x, w, gamma, beta, pool=pool,
                                    compute_dtype=dtype)
            out = jax.block_until_ready(out)
            if out.shape != ref.shape or not jnp.allclose(out, ref, atol=tol, rtol=tol):
                ok = False
                print(f"mismatch (pool={pool}, dtype={dtype.__name__}): max abs err "
                      f"{float(jnp.max(jnp.abs(out.astype(jnp.float32) - ref)))}")

    if ok:
        print("KERNEL_OK")
</pallas_src>

<mosaic_0001>
module attributes {stable_mosaic.version = 11 : i64} {
  func.func @_conv_stats_kernel(%arg0: i32, %arg1: memref<288x16xf32, #tpu.memory_space<vmem>>, %arg2: memref<3x16x128xf32, #tpu.memory_space<vmem>>, %arg3: memref<256x128xf32, #tpu.memory_space<vmem>>, %arg4: memref<1x2x128xf32, #tpu.memory_space<vmem>>) attributes {dimension_semantics = [#tpu.dimension_semantics<parallel>], iteration_bounds = array<i64: 2>, scalar_prefetch = 0 : i64, scratch_operands = 0 : i64, tpu.core_type = #tpu.core_type<tc>, window_params = [{transform_indices = @transform_0, window_bounds = array<i64: 288, 16>}, {pipeline_mode = #tpu.pipeline_mode<synchronous>, transform_indices = @transform_1, window_bounds = array<i64: 3, 16, 128>}, {transform_indices = @transform_2, window_bounds = array<i64: 256, 128>}, {transform_indices = @transform_3, window_bounds = array<i64: 1, 2, 128>}]} {
    %c0 = arith.constant 0 : index
    %c0_0 = arith.constant 0 : index
    %0 = vector.load %arg1[%c0, %c0_0] : memref<288x16xf32, #tpu.memory_space<vmem>>, vector<256x16xf32>
    %c0_1 = arith.constant 0 : index
    %c0_2 = arith.constant 0 : index
    %c0_3 = arith.constant 0 : index
    %1 = vector.load %arg2[%c0_1, %c0_2, %c0_3] : memref<3x16x128xf32, #tpu.memory_space<vmem>>, vector<1x16x128xf32>
    %2 = vector.shape_cast %1 : vector<1x16x128xf32> to vector<16x128xf32>
    %cst = arith.constant dense<0.000000e+00> : vector<256x128xf32>
    %3 = tpu.matmul %0, %2, %cst {dimension_numbers = #tpu.dot_dimension_numbers<[1], [0], [0], [1], [0, 0, 1, 1], [], []>} : vector<256x16xf32>, vector<16x128xf32>, vector<256x128xf32> -> vector<256x128xf32>
    %c16 = arith.constant 16 : index
    %c0_4 = arith.constant 0 : index
    %4 = vector.load %arg1[%c16, %c0_4] : memref<288x16xf32, #tpu.memory_space<vmem>>, vector<256x16xf32>
    %c1 = arith.constant 1 : index
    %c0_5 = arith.constant 0 : index
    %c0_6 = arith.constant 0 : index
    %5 = vector.load %arg2[%c1, %c0_5, %c0_6] : memref<3x16x128xf32, #tpu.memory_space<vmem>>, vector<1x16x128xf32>
    %6 = vector.shape_cast %5 : vector<1x16x128xf32> to vector<16x128xf32>
    %cst_7 = arith.constant dense<0.000000e+00> : vector<256x128xf32>
    %7 = tpu.matmul %4, %6, %cst_7 {dimension_numbers = #tpu.dot_dimension_numbers<[1], [0], [0], [1], [0, 0, 1, 1], [], []>} : vector<256x16xf32>, vector<16x128xf32>, vector<256x128xf32> -> vector<256x128xf32>
    %8 = arith.addf %3, %7 : vector<256x128xf32>
    %c32 = arith.constant 32 : index
    %c0_8 = arith.constant 0 : index
    %9 = vector.load %arg1[%c32, %c0_8] : memref<288x16xf32, #tpu.memory_space<vmem>>, vector<256x16xf32>
    %c2 = arith.constant 2 : index
    %c0_9 = arith.constant 0 : index
    %c0_10 = arith.constant 0 : index
    %10 = vector.load %arg2[%c2, %c0_9, %c0_10] : memref<3x16x128xf32, #tpu.memory_space<vmem>>, vector<1x16x128xf32>
    %11 = vector.shape_cast %10 : vector<1x16x128xf32> to vector<16x128xf32>
    %cst_11 = arith.constant dense<0.000000e+00> : vector<256x128xf32>
    %12 = tpu.matmul %9, %11, %cst_11 {dimension_numbers = #tpu.dot_dimension_numbers<[1], [0], [0], [1], [0, 0, 1, 1], [], []>} : vector<256x16xf32>, vector<16x128xf32>, vector<256x128xf32> -> vector<256x128xf32>
    %13 = arith.addf %8, %12 : vector<256x128xf32>
    %c0_12 = arith.constant 0 : index
    %c0_13 = arith.constant 0 : index
    %14 = vector.load %arg3[%c0_12, %c0_13] : memref<256x128xf32, #tpu.memory_space<vmem>>, vector<256x128xf32>
    tpu.vector_store %arg3[%c0_12, %c0_13], %13 {strides = array<i32>} : memref<256x128xf32, #tpu.memory_space<vmem>>, vector<256x128xf32>,
    %cst_14 = arith.constant dense<0.000000e+00> : vector<128xf32>
    %15 = vector.multi_reduction <add>, %13, %cst_14 [0] : vector<256x128xf32> to vector<128xf32>
    %16 = vector.shape_cast %15 : vector<128xf32> to vector<1x128xf32>
    %cst_15 = arith.constant 3.906250e-03 : f32
    %17 = vector.broadcast %cst_15 : f32 to vector<1x128xf32>
    %18 = arith.mulf %16, %17 : vector<1x128xf32>
    %19 = vector.broadcast %18 : vector<1x128xf32> to vector<256x128xf32>
    %20 = arith.subf %13, %19 : vector<256x128xf32>
    %21 = arith.mulf %20, %20 : vector<256x128xf32>
    %cst_16 = arith.constant dense<0.000000e+00> : vector<128xf32>
    %22 = vector.multi_reduction <add>, %21, %cst_16 [0] : vector<256x128xf32> to vector<128xf32>
    %23 = vector.shape_cast %22 : vector<128xf32> to vector<1x128xf32>
    %24 = tpu.concatenate %18, %23 in 0 : vector<1x128xf32>, vector<1x128xf32> -> vector<2x128xf32>
    %25 = vector.shape_cast %24 : vector<2x128xf32> to vector<1x2x128xf32>
    %c0_17 = arith.constant 0 : index
    %c0_18 = arith.constant 0 : index
    %c0_19 = arith.constant 0 : index
    %26 = vector.load %arg4[%c0_17, %c0_18, %c0_19] : memref<1x2x128xf32, #tpu.memory_space<vmem>>, vector<1x2x128xf32>
    tpu.vector_store %arg4[%c0_17, %c0_18, %c0_19], %25 {strides = array<i32>} : memref<1x2x128xf32, #tpu.memory_space<vmem>>, vector<1x2x128xf32>,
    return
  }
  func.func @transform_0(%arg0: i32) -> (i32, i32) {
    %c0_i32 = arith.constant 0 : i32
    %c0_i32_0 = arith.constant 0 : i32
    return %arg0, %c0_i32 : i32, i32
  }
  func.func @transform_1(%arg0: i32) -> (i32, i32, i32) {
    %c0_i32 = arith.constant 0 : i32
    %c0_i32_0 = arith.constant 0 : i32
    %c0_i32_1 = arith.constant 0 : i32
    %c0_i32_2 = arith.constant 0 : i32
    return %c0_i32, %c0_i32_0, %c0_i32_1 : i32, i32, i32
  }
  func.func @transform_2(%arg0: i32) -> (i32, i32) {
    %c0_i32 = arith.constant 0 : i32
    %c0_i32_0 = arith.constant 0 : i32
    return %arg0, %c0_i32 : i32, i32
  }
  func.func @transform_3(%arg0: i32) -> (i32, i32, i32) {
    %c0_i32 = arith.constant 0 : i32
    %c0_i32_0 = arith.constant 0 : i32
    %c0_i32_1 = arith.constant 0 : i32
    return %arg0, %c0_i32, %c0_i32_0 : i32, i32, i32
  }
}

module attributes {stable_mosaic.version = 11 : i64} {
  func.func @_bn_pool_relu_kernel(%arg0: i32, %arg1: memref<256x128xf32, #tpu.memory_space<vmem>>, %arg2: memref<1x128xf32, #tpu.memory_space<vmem>>, %arg3: memref<1x128xf32, #tpu.memory_space<vmem>>, %arg4: memref<256x128xf32, #tpu.memory_space<vmem>>) attributes {dimension_semantics = [#tpu.dimension_semantics<parallel>], iteration_bounds = array<i64: 2>, scalar_prefetch = 0 : i64, scratch_operands = 0 : i64, tpu.core_type = #tpu.core_type<tc>, window_params = [{transform_indices = @transform_0, window_bounds = array<i64: 256, 128>}, {pipeline_mode = #tpu.pipeline_mode<synchronous>, transform_indices = @transform_1, window_bounds = array<i64: 1, 128>}, {pipeline_mode = #tpu.pipeline_mode<synchronous>, transform_indices = @transform_2, window_bounds = array<i64: 1, 128>}, {transform_indices = @transform_3, window_bounds = array<i64: 256, 128>}]} {
    %c0 = arith.constant 0 : index
    %c0_0 = arith.constant 0 : index
    %0 = vector.load %arg2[%c0, %c0_0] : memref<1x128xf32, #tpu.memory_space<vmem>>, vector<1x128xf32>
    %c0_1 = arith.constant 0 : index
    %c0_2 = arith.constant 0 : index
    %1 = vector.load %arg3[%c0_1, %c0_2] : memref<1x128xf32, #tpu.memory_space<vmem>>, vector<1x128xf32>
    %c0_3 = arith.constant 0 : index
    %c0_4 = arith.constant 0 : index
    %2 = vector.load %arg1[%c0_3, %c0_4] : memref<256x128xf32, #tpu.memory_space<vmem>>, vector<256x128xf32>
    %3 = vector.broadcast %0 : vector<1x128xf32> to vector<256x128xf32>
    %4 = arith.mulf %2, %3 : vector<256x128xf32>
    %5 = vector.broadcast %1 : vector<1x128xf32> to vector<256x128xf32>
    %6 = arith.addf %4, %5 : vector<256x128xf32>
    %cst = arith.constant 0.000000e+00 : f32
    %7 = vector.broadcast %cst : f32 to vector<256x128xf32>
    %8 = arith.maximumf %6, %7 : vector<256x128xf32>
    %c0_5 = arith.constant 0 : index
    %c0_6 = arith.constant 0 : index
    %9 = vector.load %arg4[%c0_5, %c0_6] : memref<256x128xf32, #tpu.memory_space<vmem>>, vector<256x128xf32>
    tpu.vector_store %arg4[%c0_5, %c0_6], %8 {strides = array<i32>} : memref<256x128xf32, #tpu.memory_space<vmem>>, vector<256x128xf32>,
    return
  }
  func.func @transform_0(%arg0: i32) -> (i32, i32) {
    %c0_i32 = arith.constant 0 : i32
    %c0_i32_0 = arith.constant 0 : i32
    return %arg0, %c0_i32 : i32, i32
  }
  func.func @transform_1(%arg0: i32) -> (i32, i32) {
    %c0_i32 = arith.constant 0 : i32
    %c0_i32_0 = arith.constant 0 : i32
    %c0_i32_1 = arith.constant 0 : i32
    return %c0_i32, %c0_i32_0 : i32, i32
  }
  func.func @transform_2(%arg0: i32) -> (i32, i32) {
    %c0_i32 = arith.constant 0 : i32
    %c0_i32_0 = arith.constant 0 : i32
    %c0_i32_1 = arith.constant 0 : i32
    return %c0_i32, %c0_i32_0 : i32, i32
  }
  func.func @transform_3(%arg0: i32) -> (i32, i32) {
    %c0_i32 = arith.constant 0 : i32
    %c0_i32_0 = arith.constant 0 : i32
    return %arg0, %c0_i32 : i32, i32
  }
}

</mosaic_0001>

<llo_original>
// kernel: conv_bn_relu_pool.3
$region0: #{conv_bn_relu_pool.3}
  #allocation0 [shape = 'u32[]', space=smem, size = 0x4, offset = 0x4, fixed_abs, tag = 'smem constant byte address 0x4 - core index']
  #allocation1 [shape = 'u32[144,128]{1,0:T(1,128)}', space=vmem, size = 0x12000, scoped, tag = 'internal scratch']
  %s0 = inlined_call_operand.vmem [shape: f32[512,128], index: 0, kind: input, shape index: {}]
  %s1 = inlined_call_operand.vmem [shape: f32[1,128], index: 1, kind: input, shape index: {}]
  %s2 = inlined_call_operand.vmem [shape: f32[1,128], index: 2, kind: input, shape index: {}]
  %s3 = inlined_call_operand.vmem [shape: f32[512,128], index: 3, kind: output, shape index: {}]
  %s4 = sld [smem:[#allocation0]]
  $region45: #{conv_bn_relu_pool.3} parent=0
    _
  %s6 = ssub.s32 1, %s4
  %s7 = scalar_select 0, %s6, %s4
  loop: start=0, step=1, limit=4
  $region2: #{conv_bn_relu_pool.3} parent=0 // loop_pre_header
    _
  $region3: #{conv_bn_relu_pool.3} parent=0 // loop_header
    %s9 = sphi 0, %s13
    %p10 = scmp.ge.s32.totalorder %s9, 4
    %s19 = sphi 0, %s21
    %s22 = sphi 0, %s19
    %s23 = sphi 0, %s22
    %s39 = sphi 0, %s23
    %s43 = sphi 0, %s43
    %s45 = sphi 0, %s43
    %s46 = sphi 0, %s45
    %s60 = sphi 0, %s46
    %s64 = sphi 0, %s64
    %s66 = sphi 0, %s64
    %s67 = sphi 0, %s66
    %s81 = sphi 0, %s67
    %s87 = sphi 0, %s89
    %s90 = sphi 0, %s87
    %s91 = sphi 0, %s90
    %s107 = sphi 0, %s91
  $region4: #{conv_bn_relu_pool.3} parent=0 // loop_header_branch
    %12 = sbr.rel (%p10) target = $region8
  $region5: #{conv_bn_relu_pool.3} parent=0 // loop_body
    %s14 = ssub.s32 %s9, 1
    %s15 = ssub.s32 %s9, 2
    %s16 = sadd.s32 %s9, 1
    %s17 = ssub.s32 %s9, %s16
    %p18 = scmp.eq.s32.totalorder %s17, 0
    %s20 = sadd.s32 %s19, 1
    %s21 = scalar_select %p18, %s19, %s20
    %p24 = pneg %p18
    %p25 = scmp.eq.s32.totalorder %s9, 1
    %p26 = por %p24, %p25
    %p27 = scmp.ne.s32.totalorder %s19, %s22
    %p28 = scmp.eq.s32.totalorder %s9, 0
    %p29 = por %p27, %p28
    %p30 = scmp.ne.s32.totalorder %s19, %s22
    %p31 = scmp.eq.s32.totalorder %s14, 1
    %p32 = por %p30, %p31
    %p33 = scmp.ne.s32.totalorder %s22, %s23
    %p34 = scmp.eq.s32.totalorder %s14, 0
    %p35 = por %p33, %p34
    %p36 = scmp.ne.s32.totalorder %s22, %s23
    %p37 = scmp.eq.s32.totalorder %s15, 1
    %p38 = por %p36, %p37
    %p40 = scmp.ne.s32.totalorder %s23, %s39
    %p41 = scmp.eq.s32.totalorder %s15, 0
    %p42 = por %p40, %p41
    %s44 = sadd.s32 %s43, 1
    %p47 = scmp.eq.s32.totalorder %s9, 1
    %p48 = scmp.ne.s32.totalorder %s43, %s45
    %p49 = scmp.eq.s32.totalorder %s9, 0
    %p50 = por %p48, %p49
    %p51 = scmp.ne.s32.totalorder %s43, %s45
    %p52 = scmp.eq.s32.totalorder %s14, 1
    %p53 = por %p51, %p52
    %p54 = scmp.ne.s32.totalorder %s45, %s46
    %p55 = scmp.eq.s32.totalorder %s14, 0
    %p56 = por %p54, %p55
    %p57 = scmp.ne.s32.totalorder %s45, %s46
    %p58 = scmp.eq.s32.totalorder %s15, 1
    %p59 = por %p57, %p58
    %p61 = scmp.ne.s32.totalorder %s46, %s60
    %p62 = scmp.eq.s32.totalorder %s15, 0
    %p63 = por %p61, %p62
    %s65 = sadd.s32 %s64, 1
    %p68 = scmp.eq.s32.totalorder %s9, 1
    %p69 = scmp.ne.s32.totalorder %s64, %s66
    %p70 = scmp.eq.s32.totalorder %s9, 0
    %p71 = por %p69, %p70
    %p72 = scmp.ne.s32.totalorder %s64, %s66
    %p73 = scmp.eq.s32.totalorder %s14, 1
    %p74 = por %p72, %p73
    %p75 = scmp.ne.s32.totalorder %s66, %s67
    %p76 = scmp.eq.s32.totalorder %s14, 0
    %p77 = por %p75, %p76
    %p78 = scmp.ne.s32.totalorder %s66, %s67
    %p79 = scmp.eq.s32.totalorder %s15, 1
    %p80 = por %p78, %p79
    %p82 = scmp.ne.s32.totalorder %s67, %s81
    %p83 = scmp.eq.s32.totalorder %s15, 0
    %p84 = por %p82, %p83
    %s85 = ssub.s32 %s9, %s16
    %p86 = scmp.eq.s32.totalorder %s85, 0
    %s88 = sadd.s32 %s87, 1
    %s89 = scalar_select %p86, %s87, %s88
    %p92 = pneg %p86
    %p93 = scmp.eq.s32.totalorder %s9, 1
    %p94 = por %p92, %p93
    %p95 = scmp.ne.s32.totalorder %s87, %s90
    %p96 = scmp.eq.s32.totalorder %s9, 0
    %p97 = por %p95, %p96
    %p98 = scmp.ne.s32.totalorder %s87, %s90
    %p99 = scmp.eq.s32.totalorder %s14, 1
    %p100 = por %p98, %p99
    %p101 = scmp.ne.s32.totalorder %s90, %s91
    %p102 = scmp.eq.s32.totalorder %s14, 0
    %p103 = por %p101, %p102
    %p104 = scmp.ne.s32.totalorder %s90, %s91
    %p105 = scmp.eq.s32.totalorder %s15, 1
    %p106 = por %p104, %p105
    %p108 = scmp.ne.s32.totalorder %s91, %s107
    %p109 = scmp.eq.s32.totalorder %s15, 0
    %p110 = por %p108, %p109
    %p111 = scmp.le.s32.totalorder 1, %s9
    %p112 = scmp.lt.s32.totalorder %s9, 3
    %p113 = pnand %p111, %p112
    %p114 = pneg %p113
    // Predicated region
    $region9: #{conv_bn_relu_pool.3} parent=5 // pred_check
      _
    $region10: #{conv_bn_relu_pool.3} parent=5 // pred_check_branch
      %116 = sbr.rel (%p113) target = $region12
    $region11: #{conv_bn_relu_pool.3} parent=5 // pred_region
      %s117 = ssub.s32 %s9, 1
      // Predicated region
      $region13: #{conv_bn_relu_pool.3} parent=11 // pred_check
        %p118 = pneg %p56
      $region14: #{conv_bn_relu_pool.3} parent=11 // pred_check_branch
        %120 = sbr.rel (%p118) target = $region16
      $region15: #{conv_bn_relu_pool.3} parent=11 // pred_region
        _
      $region16: #{conv_bn_relu_pool.3} parent=11 // pred_fallthru
        _
      // Predicated region
      $region17: #{conv_bn_relu_pool.3} parent=11 // pred_check
        %p121 = pneg %p77
      $region18: #{conv_bn_relu_pool.3} parent=11 // pred_check_branch
        %123 = sbr.rel (%p121) target = $region20
      $region19: #{conv_bn_relu_pool.3} parent=11 // pred_region
        _
      $region20: #{conv_bn_relu_pool.3} parent=11 // pred_fallthru
        _
    $region12: #{conv_bn_relu_pool.3} parent=5 // pred_fallthru
      _
    %p124 = scmp.lt.s32.totalorder %s9, 2
    // Predicated region
    $region21: #{conv_bn_relu_pool.3} parent=5 // pred_check
      %p125 = pneg %p124
    $region22: #{conv_bn_relu_pool.3} parent=5 // pred_check_branch
      %127 = sbr.rel (%p125) target = $region24
    $region23: #{conv_bn_relu_pool.3} parent=5 // pred_region
      // Predicated region
      $region25: #{conv_bn_relu_pool.3} parent=23 // pred_check
        %p128 = pneg %p29
      $region26: #{conv_bn_relu_pool.3} parent=23 // pred_check_branch
        %130 = sbr.rel (%p128) target = $region28
      $region27: #{conv_bn_relu_pool.3} parent=23 // pred_region
        %s131 = smul.u32 32, %s9
        %p132 = scmp.lt.s32.totalorder %s131, 63
        %s133 = scalar_select %p132, %s131, 63
        %s134 = smul.addr %s133, 8
        %s135 = scalar_lea.vmem %s0, %s134
        %s136 = smul.u32 32, %s9
      $region28: #{conv_bn_relu_pool.3} parent=23 // pred_fallthru
        _
    $region24: #{conv_bn_relu_pool.3} parent=5 // pred_fallthru
      _
    %p137 = scmp.le.s32.totalorder 1, %s9
    %p138 = scmp.lt.s32.totalorder %s9, 3
    %p139 = pnand %p137, %p138
    %p140 = pneg %p139
    // Predicated region
    $region29: #{conv_bn_relu_pool.3} parent=5 // pred_check
      _
    $region30: #{conv_bn_relu_pool.3} parent=5 // pred_check_branch
      %142 = sbr.rel (%p139) target = $region32
    $region31: #{conv_bn_relu_pool.3} parent=5 // pred_region
      %s143 = ssub.s32 %s9, 1
      %s144 = smul.u32 32, %s14
      %p145 = scmp.lt.s32.totalorder %s144, 63
      %s146 = scalar_select %p145, %s144, 63
      %s147 = smul.addr %s146, 8
      %s148 = scalar_lea.vmem %s0, %s147
      %p149 = pneg %p35
      %p150 = pneg %p32
      %p151 = pneg %p56
      %p152 = pneg %p53
      %p153 = pneg %p77
      %p154 = pneg %p74
      %p155 = pneg %p103
      %p156 = pneg %p100
      %s157 = smul.u32 32, %s14
      %p158 = scmp.lt.s32.totalorder %s157, 63
      %s159 = scalar_select %p158, %s157, 63
      %s160 = smul.addr %s159, 8
      %s161 = scalar_lea.vmem %s3, %s160
      %s162 = smul.u32 32, %s14
      %p163 = scmp.lt.s32.totalorder %s162, 63
      %s164 = scalar_select %p163, %s162, 63
      %s165 = smul.addr %s164, 8
      %s166 = scalar_lea.vmem %s0, %s165
      %s167 = smul.u32 32, %s14
      %s168 = smul.u32 32, %s14
      %p169 = scmp.lt.s32.totalorder %s168, 63
      %s170 = scalar_select %p169, %s168, 63
      %s171 = smul.addr %s170, 8
      %s172 = scalar_lea.vmem %s3, %s171
      %s173 = smul.u32 32, %s14
      %v174 = vld [vmem:[%s1] sm:$0x1]
      %v175 = vld [vmem:[%s2] sm:$0x1]
      %v176 = vld [vmem:[%s166] sm:$0xff]
      %v177 = vld [vmem:[%s166 + $0x8] sm:$0xff]
      %v178 = vld [vmem:[%s166 + $0x10] sm:$0xff]
      %v179 = vld [vmem:[%s166 + $0x18] sm:$0xff]
      %v180 = vld [vmem:[%s166 + $0x20] sm:$0xff]
      %v181 = vld [vmem:[%s166 + $0x28] sm:$0xff]
      %v182 = vld [vmem:[%s166 + $0x30] sm:$0xff]
      %v183 = vld [vmem:[%s166 + $0x38] sm:$0xff]
      %v184 = vld [vmem:[%s166 + $0x40] sm:$0xff]
      %v185 = vld [vmem:[%s166 + $0x48] sm:$0xff]
      %v186 = vld [vmem:[%s166 + $0x50] sm:$0xff]
      %v187 = vld [vmem:[%s166 + $0x58] sm:$0xff]
      %v188 = vld [vmem:[%s166 + $0x60] sm:$0xff]
      %v189 = vld [vmem:[%s166 + $0x68] sm:$0xff]
      %v190 = vld [vmem:[%s166 + $0x70] sm:$0xff]
      %v191 = vld [vmem:[%s166 + $0x78] sm:$0xff]
      %v192 = vld [vmem:[%s166 + $0x80] sm:$0xff]
      %v193 = vld [vmem:[%s166 + $0x88] sm:$0xff]
      %v194 = vld [vmem:[%s166 + $0x90] sm:$0xff]
      %v195 = vld [vmem:[%s166 + $0x98] sm:$0xff]
      %v196 = vld [vmem:[%s166 + $0xa0] sm:$0xff]
      %v197 = vld [vmem:[%s166 + $0xa8] sm:$0xff]
      %v198 = vld [vmem:[%s166 + $0xb0] sm:$0xff]
      %v199 = vld [vmem:[%s166 + $0xb8] sm:$0xff]
      %v200 = vld [vmem:[%s166 + $0xc0] sm:$0xff]
      %v201 = vld [vmem:[%s166 + $0xc8] sm:$0xff]
      %v202 = vld [vmem:[%s166 + $0xd0] sm:$0xff]
      %v203 = vld [vmem:[%s166 + $0xd8] sm:$0xff]
      %v204 = vld [vmem:[%s166 + $0xe0] sm:$0xff]
      %v205 = vld [vmem:[%s166 + $0xe8] sm:$0xff]
      %v206 = vld [vmem:[%s166 + $0xf0] sm:$0xff]
      %v207 = vld [vmem:[%s166 + $0xf8] sm:$0xff]
      %v209 = vlaneseq
      %v210 = vshrl.u32 %v209, 7
      %v211 = vsub.s32 0, %v210
      %v212 = vrot.slane %v174, %v211
      %v214 = vmul.f32 %v176, %v212
      %v215 = vmul.f32 %v177, %v212
      %v216 = vmul.f32 %v178, %v212
      %v217 = vmul.f32 %v179, %v212
      %v218 = vmul.f32 %v180, %v212
      %v219 = vmul.f32 %v181, %v212
      %v220 = vmul.f32 %v182, %v212
      %v221 = vmul.f32 %v183, %v212
      %v222 = vmul.f32 %v184, %v212
      %v223 = vmul.f32 %v185, %v212
      %v224 = vmul.f32 %v186, %v212
      %v225 = vmul.f32 %v187, %v212
      %v226 = vmul.f32 %v188, %v212
      %v227 = vmul.f32 %v189, %v212
      %v228 = vmul.f32 %v190, %v212
      %v229 = vmul.f32 %v191, %v212
      %v230 = vmul.f32 %v192, %v212
      %v231 = vmul.f32 %v193, %v212
      %v232 = vmul.f32 %v194, %v212
      %v233 = vmul.f32 %v195, %v212
      %v234 = vmul.f32 %v196, %v212
      %v235 = vmul.f32 %v197, %v212
      %v236 = vmul.f32 %v198, %v212
      %v237 = vmul.f32 %v199, %v212
      %v238 = vmul.f32 %v200, %v212
      %v239 = vmul.f32 %v201, %v212
      %v240 = vmul.f32 %v202, %v212
      %v241 = vmul.f32 %v203, %v212
      %v242 = vmul.f32 %v204, %v212
      %v243 = vmul.f32 %v205, %v212
      %v244 = vmul.f32 %v206, %v212
      %v245 = vmul.f32 %v207, %v212
      %v247 = vlaneseq
      %v248 = vshrl.u32 %v247, 7
      %v249 = vsub.s32 0, %v248
      %v250 = vrot.slane %v175, %v249
      %v252 = vadd.f32 %v214, %v250
      %v253 = vadd.f32 %v215, %v250
      %v254 = vadd.f32 %v216, %v250
      %v255 = vadd.f32 %v217, %v250
      %v256 = vadd.f32 %v218, %v250
      %v257 = vadd.f32 %v219, %v250
      %v258 = vadd.f32 %v220, %v250
      %v259 = vadd.f32 %v221, %v250
      %v260 = vadd.f32 %v222, %v250
      %v261 = vadd.f32 %v223, %v250
      %v262 = vadd.f32 %v224, %v250
      %v263 = vadd.f32 %v225, %v250
      %v264 = vadd.f32 %v226, %v250
      %v265 = vadd.f32 %v227, %v250
      %v266 = vadd.f32 %v228, %v250
      %v267 = vadd.f32 %v229, %v250
      %v268 = vadd.f32 %v230, %v250
      %v269 = vadd.f32 %v231, %v250
      %v270 = vadd.f32 %v232, %v250
      %v271 = vadd.f32 %v233, %v250
      %v272 = vadd.f32 %v234, %v250
      %v273 = vadd.f32 %v235, %v250
      %v274 = vadd.f32 %v236, %v250
      %v275 = vadd.f32 %v237, %v250
      %v276 = vadd.f32 %v238, %v250
      %v277 = vadd.f32 %v239, %v250
      %v278 = vadd.f32 %v240, %v250
      %v279 = vadd.f32 %v241, %v250
      %v280 = vadd.f32 %v242, %v250
      %v281 = vadd.f32 %v243, %v250
      %v282 = vadd.f32 %v244, %v250
      %v283 = vadd.f32 %v245, %v250
      %v284 = vmax.f32 %v252, 0.0
      %v285 = vmax.f32 %v253, 0.0
      %v286 = vmax.f32 %v254, 0.0
      %v287 = vmax.f32 %v255, 0.0
      %v288 = vmax.f32 %v256, 0.0
      %v289 = vmax.f32 %v257, 0.0
      %v290 = vmax.f32 %v258, 0.0
      %v291 = vmax.f32 %v259, 0.0
      %v292 = vmax.f32 %v260, 0.0
      %v293 = vmax.f32 %v261, 0.0
      %v294 = vmax.f32 %v262, 0.0
      %v295 = vmax.f32 %v263, 0.0
      %v296 = vmax.f32 %v264, 0.0
      %v297 = vmax.f32 %v265, 0.0
      %v298 = vmax.f32 %v266, 0.0
      %v299 = vmax.f32 %v267, 0.0
      %v300 = vmax.f32 %v268, 0.0
      %v301 = vmax.f32 %v269, 0.0
      %v302 = vmax.f32 %v270, 0.0
      %v303 = vmax.f32 %v271, 0.0
      %v304 = vmax.f32 %v272, 0.0
      %v305 = vmax.f32 %v273, 0.0
      %v306 = vmax.f32 %v274, 0.0
      %v307 = vmax.f32 %v275, 0.0
      %v308 = vmax.f32 %v276, 0.0
      %v309 = vmax.f32 %v277, 0.0
      %v310 = vmax.f32 %v278, 0.0
      %v311 = vmax.f32 %v279, 0.0
      %v312 = vmax.f32 %v280, 0.0
      %v313 = vmax.f32 %v281, 0.0
      %v314 = vmax.f32 %v282, 0.0
      %v315 = vmax.f32 %v283, 0.0
      %316 = vst [vmem:[%s172] sm:$0xff] %v284
      %317 = vst [vmem:[%s172 + $0x8] sm:$0xff] %v285
      %318 = vst [vmem:[%s172 + $0x10] sm:$0xff] %v286
      %319 = vst [vmem:[%s172 + $0x18] sm:$0xff] %v287
      %320 = vst [vmem:[%s172 + $0x20] sm:$0xff] %v288
      %321 = vst [vmem:[%s172 + $0x28] sm:$0xff] %v289
      %322 = vst [vmem:[%s172 + $0x30] sm:$0xff] %v290
      %323 = vst [vmem:[%s172 + $0x38] sm:$0xff] %v291
      %324 = vst [vmem:[%s172 + $0x40] sm:$0xff] %v292
      %325 = vst [vmem:[%s172 + $0x48] sm:$0xff] %v293
      %326 = vst [vmem:[%s172 + $0x50] sm:$0xff] %v294
      %327 = vst [vmem:[%s172 + $0x58] sm:$0xff] %v295
      %328 = vst [vmem:[%s172 + $0x60] sm:$0xff] %v296
      %329 = vst [vmem:[%s172 + $0x68] sm:$0xff] %v297
      %330 = vst [vmem:[%s172 + $0x70] sm:$0xff] %v298
      %331 = vst [vmem:[%s172 + $0x78] sm:$0xff] %v299
      %332 = vst [vmem:[%s172 + $0x80] sm:$0xff] %v300
      %333 = vst [vmem:[%s172 + $0x88] sm:$0xff] %v301
      %334 = vst [vmem:[%s172 + $0x90] sm:$0xff] %v302
      %335 = vst [vmem:[%s172 + $0x98] sm:$0xff] %v303
      %336 = vst [vmem:[%s172 + $0xa0] sm:$0xff] %v304
      %337 = vst [vmem:[%s172 + $0xa8] sm:$0xff] %v305
      %338 = vst [vmem:[%s172 + $0xb0] sm:$0xff] %v306
      %339 = vst [vmem:[%s172 + $0xb8] sm:$0xff] %v307
      %340 = vst [vmem:[%s172 + $0xc0] sm:$0xff] %v308
      %341 = vst [vmem:[%s172 + $0xc8] sm:$0xff] %v309
      %342 = vst [vmem:[%s172 + $0xd0] sm:$0xff] %v310
      %343 = vst [vmem:[%s172 + $0xd8] sm:$0xff] %v311
      %344 = vst [vmem:[%s172 + $0xe0] sm:$0xff] %v312
      %345 = vst [vmem:[%s172 + $0xe8] sm:$0xff] %v313
      %346 = vst [vmem:[%s172 + $0xf0] sm:$0xff] %v314
      %347 = vst [vmem:[%s172 + $0xf8] sm:$0xff] %v315
      %s348 = smul.u32 32, %s14
      %p349 = scmp.lt.s32.totalorder %s348, 63
      %s350 = scalar_select %p349, %s348, 63
      %s351 = smul.addr %s350, 8
      %s352 = scalar_lea.vmem %s3, %s351
      // Predicated region
      $region33: #{conv_bn_relu_pool.3} parent=31 // pred_check
        %p353 = pneg %p100
      $region34: #{conv_bn_relu_pool.3} parent=31 // pred_check_branch
        %355 = sbr.rel (%p353) target = $region36
      $region35: #{conv_bn_relu_pool.3} parent=31 // pred_region
        %s356 = smul.u32 32, %s14
      $region36: #{conv_bn_relu_pool.3} parent=31 // pred_fallthru
        _
    $region32: #{conv_bn_relu_pool.3} parent=5 // pred_fallthru
      _
    %p357 = scmp.le.s32.totalorder 2, %s9
    // Predicated region
    $region37: #{conv_bn_relu_pool.3} parent=5 // pred_check
      %p358 = pneg %p357
    $region38: #{conv_bn_relu_pool.3} parent=5 // pred_check_branch
      %360 = sbr.rel (%p358) target = $region40
    $region39: #{conv_bn_relu_pool.3} parent=5 // pred_region
      %s361 = ssub.s32 %s9, 2
      // Predicated region
      $region41: #{conv_bn_relu_pool.3} parent=39 // pred_check
        %p362 = pneg %p106
      $region42: #{conv_bn_relu_pool.3} parent=39 // pred_check_branch
        %364 = sbr.rel (%p362) target = $region44
      $region43: #{conv_bn_relu_pool.3} parent=39 // pred_region
        %s365 = smul.u32 32, %s15
        %p366 = scmp.lt.s32.totalorder %s365, 63
        %s367 = scalar_select %p366, %s365, 63
        %s368 = smul.addr %s367, 8
        %s369 = scalar_lea.vmem %s3, %s368
      $region44: #{conv_bn_relu_pool.3} parent=39 // pred_fallthru
        _
    $region40: #{conv_bn_relu_pool.3} parent=5 // pred_fallthru
      _
  $region6: #{conv_bn_relu_pool.3} parent=0 // loop_footer
    %s13 = sadd.s32 1, %s9
  $region7: #{conv_bn_relu_pool.3} parent=0 // loop_footer_branch
    %8 = sbr.rel target = $region3
  $region8: #{conv_bn_relu_pool.3} parent=0 // loop_exit
    _

// kernel: conv_bn_relu_pool.2
$region0: #{conv_bn_relu_pool.2}
  #allocation0 [shape = 'u32[]', space=smem, size = 0x4, offset = 0x4, fixed_abs, tag = 'smem constant byte address 0x4 - core index']
  #allocation1 [shape = 'u32[144,128]{1,0:T(1,128)}', space=vmem, size = 0x12000, scoped, tag = 'internal scratch']
  %s0 = inlined_call_operand.vmem [shape: f32[576,16], index: 0, kind: input, shape index: {}]
  %s1 = inlined_call_operand.vmem [shape: f32[3,16,128], index: 1, kind: input, shape index: {}]
  %s2 = inlined_call_operand.vmem [shape: f32[512,128], index: 2, kind: output, shape index: {0}]
  %s3 = inlined_call_operand.vmem [shape: f32[2,2,128], index: 3, kind: output, shape index: {1}]
  %4 = xla_tuple %s2, %s3
  %s5 = sld [smem:[#allocation0]]
  $region49: #{conv_bn_relu_pool.2} parent=0
    _
  %s7 = ssub.s32 1, %s5
  %s8 = scalar_select 0, %s7, %s5
  loop: start=0, step=1, limit=4
  $region2: #{conv_bn_relu_pool.2} parent=0 // loop_pre_header
    _
  $region3: #{conv_bn_relu_pool.2} parent=0 // loop_header
    %s10 = sphi 0, %s14
    %p11 = scmp.ge.s32.totalorder %s10, 4
    %s20 = sphi 0, %s22
    %s23 = sphi 0, %s20
    %s24 = sphi 0, %s23
    %s40 = sphi 0, %s24
    %s44 = sphi 0, %s44
    %s46 = sphi 0, %s44
    %s47 = sphi 0, %s46
    %s61 = sphi 0, %s47
    %s67 = sphi 0, %s69
    %s70 = sphi 0, %s67
    %s71 = sphi 0, %s70
    %s87 = sphi 0, %s71
    %s93 = sphi 0, %s95
    %s96 = sphi 0, %s93
    %s97 = sphi 0, %s96
    %s113 = sphi 0, %s97
  $region4: #{conv_bn_relu_pool.2} parent=0 // loop_header_branch
    %13 = sbr.rel (%p11) target = $region8
  $region5: #{conv_bn_relu_pool.2} parent=0 // loop_body
    %s15 = ssub.s32 %s10, 1
    %s16 = ssub.s32 %s10, 2
    %s17 = sadd.s32 %s10, 1
    %s18 = ssub.s32 %s10, %s17
    %p19 = scmp.eq.s32.totalorder %s18, 0
    %s21 = sadd.s32 %s20, 1
    %s22 = scalar_select %p19, %s20, %s21
    %p25 = pneg %p19
    %p26 = scmp.eq.s32.totalorder %s10, 1
    %p27 = por %p25, %p26
    %p28 = scmp.ne.s32.totalorder %s20, %s23
    %p29 = scmp.eq.s32.totalorder %s10, 0
    %p30 = por %p28, %p29
    %p31 = scmp.ne.s32.totalorder %s20, %s23
    %p32 = scmp.eq.s32.totalorder %s15, 1
    %p33 = por %p31, %p32
    %p34 = scmp.ne.s32.totalorder %s23, %s24
    %p35 = scmp.eq.s32.totalorder %s15, 0
    %p36 = por %p34, %p35
    %p37 = scmp.ne.s32.totalorder %s23, %s24
    %p38 = scmp.eq.s32.totalorder %s16, 1
    %p39 = por %p37, %p38
    %p41 = scmp.ne.s32.totalorder %s24, %s40
    %p42 = scmp.eq.s32.totalorder %s16, 0
    %p43 = por %p41, %p42
    %s45 = sadd.s32 %s44, 1
    %p48 = scmp.eq.s32.totalorder %s10, 1
    %p49 = scmp.ne.s32.totalorder %s44, %s46
    %p50 = scmp.eq.s32.totalorder %s10, 0
    %p51 = por %p49, %p50
    %p52 = scmp.ne.s32.totalorder %s44, %s46
    %p53 = scmp.eq.s32.totalorder %s15, 1
    %p54 = por %p52, %p53
    %p55 = scmp.ne.s32.totalorder %s46, %s47
    %p56 = scmp.eq.s32.totalorder %s15, 0
    %p57 = por %p55, %p56
    %p58 = scmp.ne.s32.totalorder %s46, %s47
    %p59 = scmp.eq.s32.totalorder %s16, 1
    %p60 = por %p58, %p59
    %p62 = scmp.ne.s32.totalorder %s47, %s61
    %p63 = scmp.eq.s32.totalorder %s16, 0
    %p64 = por %p62, %p63
    %s65 = ssub.s32 %s10, %s17
    %p66 = scmp.eq.s32.totalorder %s65, 0
    %s68 = sadd.s32 %s67, 1
    %s69 = scalar_select %p66, %s67, %s68
    %p72 = pneg %p66
    %p73 = scmp.eq.s32.totalorder %s10, 1
    %p74 = por %p72, %p73
    %p75 = scmp.ne.s32.totalorder %s67, %s70
    %p76 = scmp.eq.s32.totalorder %s10, 0
    %p77 = por %p75, %p76
    %p78 = scmp.ne.s32.totalorder %s67, %s70
    %p79 = scmp.eq.s32.totalorder %s15, 1
    %p80 = por %p78, %p79
    %p81 = scmp.ne.s32.totalorder %s70, %s71
    %p82 = scmp.eq.s32.totalorder %s15, 0
    %p83 = por %p81, %p82
    %p84 = scmp.ne.s32.totalorder %s70, %s71
    %p85 = scmp.eq.s32.totalorder %s16, 1
    %p86 = por %p84, %p85
    %p88 = scmp.ne.s32.totalorder %s71, %s87
    %p89 = scmp.eq.s32.totalorder %s16, 0
    %p90 = por %p88, %p89
    %s91 = ssub.s32 %s10, %s17
    %p92 = scmp.eq.s32.totalorder %s91, 0
    %s94 = sadd.s32 %s93, 1
    %s95 = scalar_select %p92, %s93, %s94
    %p98 = pneg %p92
    %p99 = scmp.eq.s32.totalorder %s10, 1
    %p100 = por %p98, %p99
    %p101 = scmp.ne.s32.totalorder %s93, %s96
    %p102 = scmp.eq.s32.totalorder %s10, 0
    %p103 = por %p101, %p102
    %p104 = scmp.ne.s32.totalorder %s93, %s96
    %p105 = scmp.eq.s32.totalorder %s15, 1
    %p106 = por %p104, %p105
    %p107 = scmp.ne.s32.totalorder %s96, %s97
    %p108 = scmp.eq.s32.totalorder %s15, 0
    %p109 = por %p107, %p108
    %p110 = scmp.ne.s32.totalorder %s96, %s97
    %p111 = scmp.eq.s32.totalorder %s16, 1
    %p112 = por %p110, %p111
    %p114 = scmp.ne.s32.totalorder %s97, %s113
    %p115 = scmp.eq.s32.totalorder %s16, 0
    %p116 = por %p114, %p115
    %p117 = scmp.le.s32.totalorder 1, %s10
    %p118 = scmp.lt.s32.totalorder %s10, 3
    %p119 = pnand %p117, %p118
    %p120 = pneg %p119
    // Predicated region
    $region9: #{conv_bn_relu_pool.2} parent=5 // pred_check
      _
    $region10: #{conv_bn_relu_pool.2} parent=5 // pred_check_branch
      %122 = sbr.rel (%p119) target = $region12
    $region11: #{conv_bn_relu_pool.2} parent=5 // pred_region
      %s123 = ssub.s32 %s10, 1
      // Predicated region
      $region13: #{conv_bn_relu_pool.2} parent=11 // pred_check
        %p124 = pneg %p57
      $region14: #{conv_bn_relu_pool.2} parent=11 // pred_check_branch
        %126 = sbr.rel (%p124) target = $region16
      $region15: #{conv_bn_relu_pool.2} parent=11 // pred_region
        _
      $region16: #{conv_bn_relu_pool.2} parent=11 // pred_fallthru
        _
    $region12: #{conv_bn_relu_pool.2} parent=5 // pred_fallthru
      _
    %p127 = scmp.lt.s32.totalorder %s10, 2
    // Predicated region
    $region17: #{conv_bn_relu_pool.2} parent=5 // pred_check
      %p128 = pneg %p127
    $region18: #{conv_bn_relu_pool.2} parent=5 // pred_check_branch
      %130 = sbr.rel (%p128) target = $region20
    $region19: #{conv_bn_relu_pool.2} parent=5 // pred_region
      // Predicated region
      $region21: #{conv_bn_relu_pool.2} parent=19 // pred_check
        %p131 = pneg %p30
      $region22: #{conv_bn_relu_pool.2} parent=19 // pred_check_branch
        %133 = sbr.rel (%p131) target = $region24
      $region23: #{conv_bn_relu_pool.2} parent=19 // pred_region
        %s134 = smul.u32 36, %s10
        %p135 = scmp.lt.s32.totalorder %s134, 71
        %s136 = scalar_select %p135, %s134, 71
        %s137 = smul.addr %s136, 8
        %s138 = scalar_lea.vmem %s0, %s137
        %s139 = smul.u32 36, %s10
      $region24: #{conv_bn_relu_pool.2} parent=19 // pred_fallthru
        _
    $region20: #{conv_bn_relu_pool.2} parent=5 // pred_fallthru
      _
    %p140 = scmp.le.s32.totalorder 1, %s10
    %p141 = scmp.lt.s32.totalorder %s10, 3
    %p142 = pnand %p140, %p141
    %p143 = pneg %p142
    // Predicated region
    $region25: #{conv_bn_relu_pool.2} parent=5 // pred_check
      _
    $region26: #{conv_bn_relu_pool.2} parent=5 // pred_check_branch
      %145 = sbr.rel (%p142) target = $region28
    $region27: #{conv_bn_relu_pool.2} parent=5 // pred_region
      %s146 = ssub.s32 %s10, 1
      %s147 = smul.u32 36, %s15
      %p148 = scmp.lt.s32.totalorder %s147, 71
      %s149 = scalar_select %p148, %s147, 71
      %s150 = smul.addr %s149, 8
      %s151 = scalar_lea.vmem %s0, %s150
      %p152 = pneg %p36
      %p153 = pneg %p33
      %p154 = pneg %p57
      %p155 = pneg %p54
      %p156 = pneg %p83
      %p157 = pneg %p80
      %s158 = smul.u32 32, %s15
      %p159 = scmp.lt.s32.totalorder %s158, 63
      %s160 = scalar_select %p159, %s158, 63
      %s161 = smul.addr %s160, 8
      %s162 = scalar_lea.vmem %s2, %s161
      %p163 = pneg %p109
      %p164 = pneg %p106
      %p165 = scmp.lt.s32.totalorder %s15, 1
      %s166 = scalar_select %p165, %s15, 1
      %s167 = smul.addr %s166, 2
      %s168 = scalar_lea.vmem %s3, %s167
      %s169 = smul.u32 36, %s15
      %p170 = scmp.lt.s32.totalorder %s169, 71
      %s171 = scalar_select %p170, %s169, 71
      %s172 = smul.addr %s171, 8
      %s173 = scalar_lea.vmem %s0, %s172
      %s174 = smul.u32 36, %s15
      %s175 = smul.u32 32, %s15
      %p176 = scmp.lt.s32.totalorder %s175, 63
      %s177 = scalar_select %p176, %s175, 63
      %s178 = smul.addr %s177, 8
      %s179 = scalar_lea.vmem %s2, %s178
      %s180 = smul.u32 32, %s15
      %p181 = scmp.lt.s32.totalorder %s15, 1
      %s182 = scalar_select %p181, %s15, 1
      %s183 = smul.addr %s182, 2
      %s184 = scalar_lea.vmem %s3, %s183
      %v185 = vld [vmem:[%s173] sm:$0xff]
      %v186 = vld [vmem:[%s173 + $0x8] sm:$0xff]
      %v187 = vld [vmem:[%s173 + $0x10] sm:$0xff]
      %v188 = vld [vmem:[%s173 + $0x18] sm:$0xff]
      %v189 = vld [vmem:[%s173 + $0x20] sm:$0xff]
      %v190 = vld [vmem:[%s173 + $0x28] sm:$0xff]
      %v191 = vld [vmem:[%s173 + $0x30] sm:$0xff]
      %v192 = vld [vmem:[%s173 + $0x38] sm:$0xff]
      %v193 = vld [vmem:[%s173 + $0x40] sm:$0xff]
      %v194 = vld [vmem:[%s173 + $0x48] sm:$0xff]
      %v195 = vld [vmem:[%s173 + $0x50] sm:$0xff]
      %v196 = vld [vmem:[%s173 + $0x58] sm:$0xff]
      %v197 = vld [vmem:[%s173 + $0x60] sm:$0xff]
      %v198 = vld [vmem:[%s173 + $0x68] sm:$0xff]
      %v199 = vld [vmem:[%s173 + $0x70] sm:$0xff]
      %v200 = vld [vmem:[%s173 + $0x78] sm:$0xff]
      %v201 = vld [vmem:[%s173 + $0x80] sm:$0xff]
      %v202 = vld [vmem:[%s173 + $0x88] sm:$0xff]
      %v203 = vld [vmem:[%s173 + $0x90] sm:$0xff]
      %v204 = vld [vmem:[%s173 + $0x98] sm:$0xff]
      %v205 = vld [vmem:[%s173 + $0xa0] sm:$0xff]
      %v206 = vld [vmem:[%s173 + $0xa8] sm:$0xff]
      %v207 = vld [vmem:[%s173 + $0xb0] sm:$0xff]
      %v208 = vld [vmem:[%s173 + $0xb8] sm:$0xff]
      %v209 = vld [vmem:[%s173 + $0xc0] sm:$0xff]
      %v210 = vld [vmem:[%s173 + $0xc8] sm:$0xff]
      %v211 = vld [vmem:[%s173 + $0xd0] sm:$0xff]
      %v212 = vld [vmem:[%s173 + $0xd8] sm:$0xff]
      %v213 = vld [vmem:[%s173 + $0xe0] sm:$0xff]
      %v214 = vld [vmem:[%s173 + $0xe8] sm:$0xff]
      %v215 = vld [vmem:[%s173 + $0xf0] sm:$0xff]
      %v216 = vld [vmem:[%s173 + $0xf8] sm:$0xff]
      %v217 = vld [vmem:[%s1] sm:$0xff]
      %v218 = vld [vmem:[%s1 + $0x8] sm:$0xff]
      %v219 = vld [vmem:[%s173 + $0x100] sm:$0xff]
      %v220 = vld [vmem:[%s173 + $0x108] sm:$0xff]
      %s221 = scalar_lea.vmem %s1, 16
      %v222 = vld [vmem:[%s221] sm:$0xff]
      %v223 = vld [vmem:[%s221 + $0x8] sm:$0xff]
      %vm224 = vcmask 130048
      %v226 = vsel %vm224, %v187, 0
      %v229 = vsel %vm224, %v188, 0
      %v232 = vsel %vm224, %v189, 0
      %v235 = vsel %vm224, %v190, 0
      %v238 = vsel %vm224, %v191, 0
      %v241 = vsel %vm224, %v192, 0
      %v244 = vsel %vm224, %v193, 0
      %v247 = vsel %vm224, %v194, 0
      %v250 = vsel %vm224, %v195, 0
      %v253 = vsel %vm224, %v196, 0
      %v256 = vsel %vm224, %v197, 0
      %v259 = vsel %vm224, %v198, 0
      %v262 = vsel %vm224, %v199, 0
      %v265 = vsel %vm224, %v200, 0
      %v268 = vsel %vm224, %v201, 0
      %v271 = vsel %vm224, %v202, 0
      %v274 = vsel %vm224, %v203, 0
      %v277 = vsel %vm224, %v204, 0
      %v280 = vsel %vm224, %v205, 0
      %v283 = vsel %vm224, %v206, 0
      %v286 = vsel %vm224, %v207, 0
      %v289 = vsel %vm224, %v208, 0
      %v292 = vsel %vm224, %v209, 0
      %v295 = vsel %vm224, %v210, 0
      %v298 = vsel %vm224, %v211, 0
      %v301 = vsel %vm224, %v212, 0
      %v304 = vsel %vm224, %v213, 0
      %v307 = vsel %vm224, %v214, 0
      %v310 = vsel %vm224, %v215, 0
      %v313 = vsel %vm224, %v216, 0
      %v316 = vsel %vm224, %v219, 0
      %v319 = vsel %vm224, %v220, 0
      %321 = vmatprep.subr.mxu0 0.0
      %322 = vmatpush1.msra.mxu0 %v222
      %323 = vmatprep.subr.mxu0 0.0
      %324 = vmatpush1.msra.mxu0 %v223
      %325 = vmatprep.subr.mxu0 0.0
      %326 = vmatpush1.msra.mxu0 0.0
      %327 = vmatprep.subr.mxu0 0.0
      %328 = vmatpush1.msra.mxu0 0.0
      %329 = vmatprep.subr.mxu0 0.0
      %330 = vmatpush1.msra.mxu0 0.0
      %331 = vmatprep.subr.mxu0 0.0
      %332 = vmatpush1.msra.mxu0 0.0
      %333 = vmatprep.subr.mxu0 0.0
      %334 = vmatpush1.msra.mxu0 0.0
      %335 = vmatprep.subr.mxu0 0.0
      %336 = vmatpush1.msra.mxu0 0.0
      %337 = vmatprep.subr.mxu0 0.0
      %338 = vmatpush1.msra.mxu0 0.0
      %339 = vmatprep.subr.mxu0 0.0
      %340 = vmatpush1.msra.mxu0 0.0
      %341 = vmatprep.subr.mxu0 0.0
      %342 = vmatpush1.msra.mxu0 0.0
      %343 = vmatprep.subr.mxu0 0.0
      %344 = vmatpush1.msra.mxu0 0.0
      %345 = vmatprep.subr.mxu0 0.0
      %346 = vmatpush1.msra.mxu0 0.0
      %347 = vmatprep.subr.mxu0 0.0
      %348 = vmatpush1.msra.mxu0 0.0
      %349 = vmatprep.subr.mxu0 0.0
      %350 = vmatpush1.msra.mxu0 0.0
      %351 = vmatprep.subr.mxu0 0.0
      %352 = vmatpush1.msra.mxu0 0.0
      %353 = vmatprep.subr.mxu0 0.0
      %354 = vmatpush1.msra.mxu0 0.0
      %355 = vmatprep.subr.mxu0 0.0
      %356 = vmatpush1.msra.mxu0 0.0
      %357 = vmatprep.subr.mxu0 0.0
      %358 = vmatpush1.msra.mxu0 0.0
      %359 = vmatprep.subr.mxu0 0.0
      %360 = vmatpush1.msra.mxu0 0.0
      %361 = vmatprep.subr.mxu0 0.0
      %362 = vmatpush1.msra.mxu0 0.0
      %363 = vmatprep.subr.mxu0 0.0
      %364 = vmatpush1.msra.mxu0 0.0
      %365 = vmatprep.subr.mxu0 0.0
      %366 = vmatpush1.msra.mxu0 0.0
      %367 = vmatprep.subr.mxu0 0.0
      %368 = vmatpush1.msra.mxu0 0.0
      %369 = vmatprep.subr.mxu0 0.0
      %370 = vmatpush1.msra.mxu0 0.0
      %371 = vmatprep.subr.mxu0 0.0
      %372 = vmatpush1.msra.mxu0 0.0
      %373 = vmatprep.subr.mxu0 0.0
      %374 = vmatpush1.msra.mxu0 0.0
      %375 = vmatprep.subr.mxu0 0.0
      %376 = vmatpush1.msra.mxu0 0.0
      %377 = vmatprep.subr.mxu0 0.0
      %378 = vmatpush1.msra.mxu0 0.0
      %379 = vmatprep.subr.mxu0 0.0
      %380 = vmatpush1.msra.mxu0 0.0
      %381 = vmatprep.subr.mxu0 0.0
      %382 = vmatpush1.msra.mxu0 0.0
      %383 = vmatprep.subr.mxu0 0.0
      %384 = vmatpush1.msra.mxu0 0.0
      %385 = vmatprep.mubr.f32.mxu0 0.0
      %386 = vmatmul.mubr.f32.gmra.mrb[0].mxu0 %v226
      %v387 = vpop.f32.mrb[0].mxu0
      %v388 = vadd.f32 0.0, %v387
      %v389 = vpop.f32.mrb[0].mxu0
      %390 = vmatprep.mubr.f32.mxu0 0.0
      %391 = vmatmul.mubr.f32.gmra.mrb[0].mxu0 %v229
      %v392 = vpop.f32.mrb[0].mxu0
      %v393 = vadd.f32 0.0, %v392
      %v394 = vpop.f32.mrb[0].mxu0
      %395 = vmatprep.mubr.f32.mxu0 0.0
      %396 = vmatmul.mubr.f32.gmra.mrb[0].mxu0 %v232
      %v397 = vpop.f32.mrb[0].mxu0
      %v398 = vadd.f32 0.0, %v397
      %v399 = vpop.f32.mrb[0].mxu0
      %400 = vmatprep.mubr.f32.mxu0 0.0
      %401 = vmatmul.mubr.f32.gmra.mrb[0].mxu0 %v235
      %v402 = vpop.f32.mrb[0].mxu0
      %v403 = vadd.f32 0.0, %v402
      %v404 = vpop.f32.mrb[0].mxu0
      %405 = vmatprep.mubr.f32.mxu0 0.0
      %406 = vmatmul.mubr.f32.gmra.mrb[0].mxu0 %v238
      %v407 = vpop.f32.mrb[0].mxu0
      %v408 = vadd.f32 0.0, %v407
      %v409 = vpop.f32.mrb[0].mxu0
      %410 = vmatprep.mubr.f32.mxu0 0.0
      %411 = vmatmul.mubr.f32.gmra.mrb[0].mxu0 %v241
      %v412 = vpop.f32.mrb[0].mxu0
      %v413 = vadd.f32 0.0, %v412
      %v414 = vpop.f32.mrb[0].mxu0
      %415 = vmatprep.mubr.f32.mxu0 0.0
      %416 = vmatmul.mubr.f32.gmra.mrb[0].mxu0 %v244
      %v417 = vpop.f32.mrb[0].mxu0
      %v418 = vadd.f32 0.0, %v417
      %v419 = vpop.f32.mrb[0].mxu0
      %420 = vmatprep.mubr.f32.mxu0 0.0
      %421 = vmatmul.mubr.f32.gmra.mrb[0].mxu0 %v247
      %v422 = vpop.f32.mrb[0].mxu0
      %v423 = vadd.f32 0.0, %v422
      %v424 = vpop.f32.mrb[0].mxu0
      %425 = vmatprep.mubr.f32.mxu0 0.0
      %426 = vmatmul.mubr.f32.gmra.mrb[0].mxu0 %v250
      %v427 = vpop.f32.mrb[0].mxu0
      %v428 = vadd.f32 0.0, %v427
      %v429 = vpop.f32.mrb[0].mxu0
      %430 = vmatprep.mubr.f32.mxu0 0.0
      %431 = vmatmul.mubr.f32.gmra.mrb[0].mxu0 %v253
      %v432 = vpop.f32.mrb[0].mxu0
      %v433 = vadd.f32 0.0, %v432
      %v434 = vpop.f32.mrb[0].mxu0
      %435 = vmatprep.mubr.f32.mxu0 0.0
      %436 = vmatmul.mubr.f32.gmra.mrb[0].mxu0 %v256
      %v437 = vpop.f32.mrb[0].mxu0
      %v438 = vadd.f32 0.0, %v437
      %v439 = vpop.f32.mrb[0].mxu0
      %440 = vmatprep.mubr.f32.mxu0 0.0
      %441 = vmatmul.mubr.f32.gmra.mrb[0].mxu0 %v259
      %v442 = vpop.f32.mrb[0].mxu0
      %v443 = vadd.f32 0.0, %v442
      %v444 = vpop.f32.mrb[0].mxu0
      %445 = vmatprep.mubr.f32.mxu0 0.0
      %446 = vmatmul.mubr.f32.gmra.mrb[0].mxu0 %v262
      %v447 = vpop.f32.mrb[0].mxu0
      %v448 = vadd.f32 0.0, %v447
      %v449 = vpop.f32.mrb[0].mxu0
      %450 = vmatprep.mubr.f32.mxu0 0.0
      %451 = vmatmul.mubr.f32.gmra.mrb[0].mxu0 %v265
      %v452 = vpop.f32.mrb[0].mxu0
      %v453 = vadd.f32 0.0, %v452
      %v454 = vpop.f32.mrb[0].mxu0
      %455 = vmatprep.mubr.f32.mxu0 0.0
      %456 = vmatmul.mubr.f32.gmra.mrb[0].mxu0 %v268
      %v457 = vpop.f32.mrb[0].mxu0
      %v458 = vadd.f32 0.0, %v457
      %v459 = vpop.f32.mrb[0].mxu0
      %460 = vmatprep.mubr.f32.mxu0 0.0
      %461 = vmatmul.mubr.f32.gmra.mrb[0].mxu0 %v271
      %v462 = vpop.f32.mrb[0].mxu0
      %v463 = vadd.f32 0.0, %v462
      %v464 = vpop.f32.mrb[0].mxu0
      %465 = vmatprep.mubr.f32.mxu0 0.0
      %466 = vmatmul.mubr.f32.gmra.mrb[0].mxu0 %v274
      %v467 = vpop.f32.mrb[0].mxu0
      %v468 = vadd.f32 0.0, %v467
      %v469 = vpop.f32.mrb[0].mxu0
      %470 = vmatprep.mubr.f32.mxu0 0.0
      %471 = vmatmul.mubr.f32.gmra.mrb[0].mxu0 %v277
      %v472 = vpop.f32.mrb[0].mxu0
      %v473 = vadd.f32 0.0, %v472
      %v474 = vpop.f32.mrb[0].mxu0
      %475 = vmatprep.mubr.f32.mxu0 0.0
      %476 = vmatmul.mubr.f32.gmra.mrb[0].mxu0 %v280
      %v477 = vpop.f32.mrb[0].mxu0
      %v478 = vadd.f32 0.0, %v477
      %v479 = vpop.f32.mrb[0].mxu0
      %480 = vmatprep.mubr.f32.mxu0 0.0
      %481 = vmatmul.mubr.f32.gmra.mrb[0].mxu0 %v283
      %v482 = vpop.f32.mrb[0].mxu0
      %v483 = vadd.f32 0.0, %v482
      %v484 = vpop.f32.mrb[0].mxu0
      %485 = vmatprep.mubr.f32.mxu0 0.0
      %486 = vmatmul.mubr.f32.gmra.mrb[0].mxu0 %v286
      %v487 = vpop.f32.mrb[0].mxu0
      %v488 = vadd.f32 0.0, %v487
      %v489 = vpop.f32.mrb[0].mxu0
      %490 = vmatprep.mubr.f32.mxu0 0.0
      %491 = vmatmul.mubr.f32.gmra.mrb[0].mxu0 %v289
      %v492 = vpop.f32.mrb[0].mxu0
      %v493 = vadd.f32 0.0, %v492
      %v494 = vpop.f32.mrb[0].mxu0
      %495 = vmatprep.mubr.f32.mxu0 0.0
      %496 = vmatmul.mubr.f32.gmra.mrb[0].mxu0 %v292
      %v497 = vpop.f32.mrb[0].mxu0
      %v498 = vadd.f32 0.0, %v497
      %v499 = vpop.f32.mrb[0].mxu0
      %500 = vmatprep.mubr.f32.mxu0 0.0
      %501 = vmatmul.mubr.f32.gmra.mrb[0].mxu0 %v295
      %v502 = vpop.f32.mrb[0].mxu0
      %v503 = vadd.f32 0.0, %v502
      %v504 = vpop.f32.mrb[0].mxu0
      %505 = vmatprep.mubr.f32.mxu0 0.0
      %506 = vmatmul.mubr.f32.gmra.mrb[0].mxu0 %v298
      %v507 = vpop.f32.mrb[0].mxu0
      %v508 = vadd.f32 0.0, %v507
      %v509 = vpop.f32.mrb[0].mxu0
      %510 = vmatprep.mubr.f32.mxu0 0.0
      %511 = vmatmul.mubr.f32.gmra.mrb[0].mxu0 %v301
      %v512 = vpop.f32.mrb[0].mxu0
      %v513 = vadd.f32 0.0, %v512
      %v514 = vpop.f32.mrb[0].mxu0
      %515 = vmatprep.mubr.f32.mxu0 0.0
      %516 = vmatmul.mubr.f32.gmra.mrb[0].mxu0 %v304
      %v517 = vpop.f32.mrb[0].mxu0
      %v518 = vadd.f32 0.0, %v517
      %v519 = vpop.f32.mrb[0].mxu0
      %520 = vmatprep.mubr.f32.mxu0 0.0
      %521 = vmatmul.mubr.f32.gmra.mrb[0].mxu0 %v307
      %v522 = vpop.f32.mrb[0].mxu0
      %v523 = vadd.f32 0.0, %v522
      %v524 = vpop.f32.mrb[0].mxu0
      %525 = vmatprep.mubr.f32.mxu0 0.0
      %526 = vmatmul.mubr.f32.gmra.mrb[0].mxu0 %v310
      %v527 = vpop.f32.mrb[0].mxu0
      %v528 = vadd.f32 0.0, %v527
      %v529 = vpop.f32.mrb[0].mxu0
      %530 = vmatprep.mubr.f32.mxu0 0.0
      %531 = vmatmul.mubr.f32.gmra.mrb[0].mxu0 %v313
      %v532 = vpop.f32.mrb[0].mxu0
      %v533 = vadd.f32 0.0, %v532
      %v534 = vpop.f32.mrb[0].mxu0
      %535 = vmatprep.mubr.f32.mxu0 0.0
      %536 = vmatmul.mubr.f32.gmra.mrb[0].mxu0 %v316
      %v537 = vpop.f32.mrb[0].mxu0
      %v538 = vadd.f32 0.0, %v537
      %v539 = vpop.f32.mrb[0].mxu0
      %540 = vmatprep.mubr.f32.mxu0 0.0
      %541 = vmatmul.mubr.f32.gmra.mrb[0].mxu0 %v319
      %v542 = vpop.f32.mrb[0].mxu0
      %v543 = vadd.f32 0.0, %v542
      %v544 = vpop.f32.mrb[0].mxu0
      %545 = vdwg.mxu0
      %v547 = vsel %vm224, %v185, 0
      %v550 = vsel %vm224, %v186, 0
      %552 = vmatprep.subr.mxu0 0.0
      %553 = vmatpush1.msra.mxu0 %v217
      %554 = vmatprep.subr.mxu0 0.0
      %555 = vmatpush1.msra.mxu0 %v218
      %556 = vmatprep.subr.mxu0 0.0
      %557 = vmatpush1.msra.mxu0 0.0
      %558 = vmatprep.subr.mxu0 0.0
      %559 = vmatpush1.msra.mxu0 0.0
      %560 = vmatprep.subr.mxu0 0.0
      %561 = vmatpush1.msra.mxu0 0.0
      %562 = vmatprep.subr.mxu0 0.0
      %563 = vmatpush1.msra.mxu0 0.0
      %564 = vmatprep.subr.mxu0 0.0
      %565 = vmatpush1.msra.mxu0 0.0
      %566 = vmatprep.subr.mxu0 0.0
      %567 = vmatpush1.msra.mxu0 0.0
      %568 = vmatprep.subr.mxu0 0.0
      %569 = vmatpush1.msra.mxu0 0.0
      %570 = vmatprep.subr.mxu0 0.0
      %571 = vmatpush1.msra.mxu0 0.0
      %572 = vmatprep.subr.mxu0 0.0
      %573 = vmatpush1.msra.mxu0 0.0
      %574 = vmatprep.subr.mxu0 0.0
      %575 = vmatpush1.msra.mxu0 0.0
      %576 = vmatprep.subr.mxu0 0.0
      %577 = vmatpush1.msra.mxu0 0.0
      %578 = vmatprep.subr.mxu0 0.0
      %579 = vmatpush1.msra.mxu0 0.0
      %580 = vmatprep.subr.mxu0 0.0
      %581 = vmatpush1.msra.mxu0 0.0
      %582 = vmatprep.subr.mxu0 0.0
      %583 = vmatpush1.msra.mxu0 0.0
      %584 = vmatprep.subr.mxu0 0.0
      %585 = vmatpush1.msra.mxu0 0.0
      %586 = vmatprep.subr.mxu0 0.0
      %587 = vmatpush1.msra.mxu0 0.0
      %588 = vmatprep.subr.mxu0 0.0
      %589 = vmatpush1.msra.mxu0 0.0
      %590 = vmatprep.subr.mxu0 0.0
      %591 = vmatpush1.msra.mxu0 0.0
      %592 = vmatprep.subr.mxu0 0.0
      %593 = vmatpush1.msra.mxu0 0.0
      %594 = vmatprep.subr.mxu0 0.0
      %595 = vmatpush1.msra.mxu0 0.0
      %596 = vmatprep.subr.mxu0 0.0
      %597 = vmatpush1.msra.mxu0 0.0
      %598 = vmatprep.subr.mxu0 0.0
      %599 = vmatpush1.msra.mxu0 0.0
      %600 = vmatprep.subr.mxu0 0.0
      %601 = vmatpush1.msra.mxu0 0.0
      %602 = vmatprep.subr.mxu0 0.0
      %603 = vmatpush1.msra.mxu0 0.0
      %604 = vmatprep.subr.mxu0 0.0
      %605 = vmatpush1.msra.mxu0 0.0
      %606 = vmatprep.subr.mxu0 0.0
      %607 = vmatpush1.msra.mxu0 0.0
      %608 = vmatprep.subr.mxu0 0.0
      %609 = vmatpush1.msra.mxu0 0.0
      %610 = vmatprep.subr.mxu0 0.0
      %611 = vmatpush1.msra.mxu0 0.0
      %612 = vmatprep.subr.mxu0 0.0
      %613 = vmatpush1.msra.mxu0 0.0
      %614 = vmatprep.subr.mxu0 0.0
      %615 = vmatpush1.msra.mxu0 0.0
      %616 = vmatprep.mubr.f32.mxu0 0.0
      %617 = vmatmul.mubr.f32.gmra.mrb[0].mxu0 %v547
      %v618 = vpop.f32.mrb[0].mxu0
      %v619 = vadd.f32 %v388, %v618
      %v620 = vpop.f32.mrb[0].mxu0
      %621 = vmatprep.mubr.f32.mxu0 0.0
      %622 = vmatmul.mubr.f32.gmra.mrb[0].mxu0 %v550
      %v623 = vpop.f32.mrb[0].mxu0
      %v624 = vadd.f32 %v393, %v623
      %v625 = vpop.f32.mrb[0].mxu0
      %626 = vmatprep.mubr.f32.mxu0 0.0
      %627 = vmatmul.mubr.f32.gmra.mrb[0].mxu0 %v226
      %v628 = vpop.f32.mrb[0].mxu0
      %v629 = vadd.f32 %v398, %v628
      %v630 = vpop.f32.mrb[0].mxu0
      %631 = vmatprep.mubr.f32.mxu0 0.0
      %632 = vmatmul.mubr.f32.gmra.mrb[0].mxu0 %v229
      %v633 = vpop.f32.mrb[0].mxu0
      %v634 = vadd.f32 %v403, %v633
      %v635 = vpop.f32.mrb[0].mxu0
      %636 = vmatprep.mubr.f32.mxu0 0.0
      %637 = vmatmul.mubr.f32.gmra.mrb[0].mxu0 %v232
      %v638 = vpop.f32.mrb[0].mxu0
      %v639 = vadd.f32 %v408, %v638
      %v640 = vpop.f32.mrb[0].mxu0
      %641 = vmatprep.mubr.f32.mxu0 0.0
      %642 = vmatmul.mubr.f32.gmra.mrb[0].mxu0 %v235
      %v643 = vpop.f32.mrb[0].mxu0
      %v644 = vadd.f32 %v413, %v643
      %v645 = vpop.f32.mrb[0].mxu0
      %646 = vmatprep.mubr.f32.mxu0 0.0
      %647 = vmatmul.mubr.f32.gmra.mrb[0].mxu0 %v238
      %v648 = vpop.f32.mrb[0].mxu0
      %v649 = vadd.f32 %v418, %v648
      %v650 = vpop.f32.mrb[0].mxu0
      %651 = vmatprep.mubr.f32.mxu0 0.0
      %652 = vmatmul.mubr.f32.gmra.mrb[0].mxu0 %v241
      %v653 = vpop.f32.mrb[0].mxu0
      %v654 = vadd.f32 %v423, %v653
      %v655 = vpop.f32.mrb[0].mxu0
      %656 = vmatprep.mubr.f32.mxu0 0.0
      %657 = vmatmul.mubr.f32.gmra.mrb[0].mxu0 %v244
      %v658 = vpop.f32.mrb[0].mxu0
      %v659 = vadd.f32 %v428, %v658
      %v660 = vpop.f32.mrb[0].mxu0
      %661 = vmatprep.mubr.f32.mxu0 0.0
      %662 = vmatmul.mubr.f32.gmra.mrb[0].mxu0 %v247
      %v663 = vpop.f32.mrb[0].mxu0
      %v664 = vadd.f32 %v433, %v663
      %v665 = vpop.f32.mrb[0].mxu0
      %666 = vmatprep.mubr.f32.mxu0 0.0
      %667 = vmatmul.mubr.f32.gmra.mrb[0].mxu0 %v250
      %v668 = vpop.f32.mrb[0].mxu0
      %v669 = vadd.f32 %v438, %v668
      %v670 = vpop.f32.mrb[0].mxu0
      %671 = vmatprep.mubr.f32.mxu0 0.0
      %672 = vmatmul.mubr.f32.gmra.mrb[0].mxu0 %v253
      %v673 = vpop.f32.mrb[0].mxu0
      %v674 = vadd.f32 %v443, %v673
      %v675 = vpop.f32.mrb[0].mxu0
      %676 = vmatprep.mubr.f32.mxu0 0.0
      %677 = vmatmul.mubr.f32.gmra.mrb[0].mxu0 %v256
      %v678 = vpop.f32.mrb[0].mxu0
      %v679 = vadd.f32 %v448, %v678
      %v680 = vpop.f32.mrb[0].mxu0
      %681 = vmatprep.mubr.f32.mxu0 0.0
      %682 = vmatmul.mubr.f32.gmra.mrb[0].mxu0 %v259
      %v683 = vpop.f32.mrb[0].mxu0
      %v684 = vadd.f32 %v453, %v683
      %v685 = vpop.f32.mrb[0].mxu0
      %686 = vmatprep.mubr.f32.mxu0 0.0
      %687 = vmatmul.mubr.f32.gmra.mrb[0].mxu0 %v262
      %v688 = vpop.f32.mrb[0].mxu0
      %v689 = vadd.f32 %v458, %v688
      %v690 = vpop.f32.mrb[0].mxu0
      %691 = vmatprep.mubr.f32.mxu0 0.0
      %692 = vmatmul.mubr.f32.gmra.mrb[0].mxu0 %v265
      %v693 = vpop.f32.mrb[0].mxu0
      %v694 = vadd.f32 %v463, %v693
      %v695 = vpop.f32.mrb[0].mxu0
      %696 = vmatprep.mubr.f32.mxu0 0.0
      %697 = vmatmul.mubr.f32.gmra.mrb[0].mxu0 %v268
      %v698 = vpop.f32.mrb[0].mxu0
      %v699 = vadd.f32 %v468, %v698
      %v700 = vpop.f32.mrb[0].mxu0
      %701 = vmatprep.mubr.f32.mxu0 0.0
      %702 = vmatmul.mubr.f32.gmra.mrb[0].mxu0 %v271
      %v703 = vpop.f32.mrb[0].mxu0
      %v704 = vadd.f32 %v473, %v703
      %v705 = vpop.f32.mrb[0].mxu0
      %706 = vmatprep.mubr.f32.mxu0 0.0
      %707 = vmatmul.mubr.f32.gmra.mrb[0].mxu0 %v274
      %v708 = vpop.f32.mrb[0].mxu0
      %v709 = vadd.f32 %v478, %v708
      %v710 = vpop.f32.mrb[0].mxu0
      %711 = vmatprep.mubr.f32.mxu0 0.0
      %712 = vmatmul.mubr.f32.gmra.mrb[0].mxu0 %v277
      %v713 = vpop.f32.mrb[0].mxu0
      %v714 = vadd.f32 %v483, %v713
      %v715 = vpop.f32.mrb[0].mxu0
      %716 = vmatprep.mubr.f32.mxu0 0.0
      %717 = vmatmul.mubr.f32.gmra.mrb[0].mxu0 %v280
      %v718 = vpop.f32.mrb[0].mxu0
      %v719 = vadd.f32 %v488, %v718
      %v720 = vpop.f32.mrb[0].mxu0
      %721 = vmatprep.mubr.f32.mxu0 0.0
      %722 = vmatmul.mubr.f32.gmra.mrb[0].mxu0 %v283
      %v723 = vpop.f32.mrb[0].mxu0
      %v724 = vadd.f32 %v493, %v723
      %v725 = vpop.f32.mrb[0].mxu0
      %726 = vmatprep.mubr.f32.mxu0 0.0
      %727 = vmatmul.mubr.f32.gmra.mrb[0].mxu0 %v286
      %v728 = vpop.f32.mrb[0].mxu0
      %v729 = vadd.f32 %v498, %v728
      %v730 = vpop.f32.mrb[0].mxu0
      %731 = vmatprep.mubr.f32.mxu0 0.0
      %732 = vmatmul.mubr.f32.gmra.mrb[0].mxu0 %v289
      %v733 = vpop.f32.mrb[0].mxu0
      %v734 = vadd.f32 %v503, %v733
      %v735 = vpop.f32.mrb[0].mxu0
      %736 = vmatprep.mubr.f32.mxu0 0.0
      %737 = vmatmul.mubr.f32.gmra.mrb[0].mxu0 %v292
      %v738 = vpop.f32.mrb[0].mxu0
      %v739 = vadd.f32 %v508, %v738
      %v740 = vpop.f32.mrb[0].mxu0
      %741 = vmatprep.mubr.f32.mxu0 0.0
      %742 = vmatmul.mubr.f32.gmra.mrb[0].mxu0 %v295
      %v743 = vpop.f32.mrb[0].mxu0
      %v744 = vadd.f32 %v513, %v743
      %v745 = vpop.f32.mrb[0].mxu0
      %746 = vmatprep.mubr.f32.mxu0 0.0
      %747 = vmatmul.mubr.f32.gmra.mrb[0].mxu0 %v298
      %v748 = vpop.f32.mrb[0].mxu0
      %v749 = vadd.f32 %v518, %v748
      %v750 = vpop.f32.mrb[0].mxu0
      %751 = vmatprep.mubr.f32.mxu0 0.0
      %752 = vmatmul.mubr.f32.gmra.mrb[0].mxu0 %v301
      %v753 = vpop.f32.mrb[0].mxu0
      %v754 = vadd.f32 %v523, %v753
      %v755 = vpop.f32.mrb[0].mxu0
      %756 = vmatprep.mubr.f32.mxu0 0.0
      %757 = vmatmul.mubr.f32.gmra.mrb[0].mxu0 %v304
      %v758 = vpop.f32.mrb[0].mxu0
      %v759 = vadd.f32 %v528, %v758
      %v760 = vpop.f32.mrb[0].mxu0
      %761 = vmatprep.mubr.f32.mxu0 0.0
      %762 = vmatmul.mubr.f32.gmra.mrb[0].mxu0 %v307
      %v763 = vpop.f32.mrb[0].mxu0
      %v764 = vadd.f32 %v533, %v763
      %v765 = vpop.f32.mrb[0].mxu0
      %766 = vmatprep.mubr.f32.mxu0 0.0
      %767 = vmatmul.mubr.f32.gmra.mrb[0].mxu0 %v310
      %v768 = vpop.f32.mrb[0].mxu0
      %v769 = vadd.f32 %v538, %v768
      %v770 = vpop.f32.mrb[0].mxu0
      %771 = vmatprep.mubr.f32.mxu0 0.0
      %772 = vmatmul.mubr.f32.gmra.mrb[0].mxu0 %v313
      %v773 = vpop.f32.mrb[0].mxu0
      %v774 = vadd.f32 %v543, %v773
      %v775 = vpop.f32.mrb[0].mxu0
      %776 = vdwg.mxu0
      %v777 = vld [vmem:[%s173 + $0x20] sm:$0xff]
      %v778 = vld [vmem:[%s173 + $0x28] sm:$0xff]
      %v779 = vld [vmem:[%s173 + $0x30] sm:$0xff]
      %v780 = vld [vmem:[%s173 + $0x38] sm:$0xff]
      %v781 = vld [vmem:[%s173 + $0x40] sm:$0xff]
      %v782 = vld [vmem:[%s173 + $0x48] sm:$0xff]
      %v783 = vld [vmem:[%s173 + $0x50] sm:$0xff]
      %v784 = vld [vmem:[%s173 + $0x58] sm:$0xff]
      %v785 = vld [vmem:[%s173 + $0x60] sm:$0xff]
      %v786 = vld [vmem:[%s173 + $0x68] sm:$0xff]
      %v787 = vld [vmem:[%s173 + $0x70] sm:$0xff]
      %v788 = vld [vmem:[%s173 + $0x78] sm:$0xff]
      %v789 = vld [vmem:[%s173 + $0x80] sm:$0xff]
      %v790 = vld [vmem:[%s173 + $0x88] sm:$0xff]
      %v791 = vld [vmem:[%s173 + $0x90] sm:$0xff]
      %v792 = vld [vmem:[%s173 + $0x98] sm:$0xff]
      %v793 = vld [vmem:[%s173 + $0xa0] sm:$0xff]
      %v794 = vld [vmem:[%s173 + $0xa8] sm:$0xff]
      %v795 = vld [vmem:[%s173 + $0xb0] sm:$0xff]
      %v796 = vld [vmem:[%s173 + $0xb8] sm:$0xff]
      %v797 = vld [vmem:[%s173 + $0xc0] sm:$0xff]
      %v798 = vld [vmem:[%s173 + $0xc8] sm:$0xff]
      %v799 = vld [vmem:[%s173 + $0xd0] sm:$0xff]
      %v800 = vld [vmem:[%s173 + $0xd8] sm:$0xff]
      %v801 = vld [vmem:[%s173 + $0xe0] sm:$0xff]
      %v802 = vld [vmem:[%s173 + $0xe8] sm:$0xff]
      %v803 = vld [vmem:[%s173 + $0xf0] sm:$0xff]
      %v804 = vld [vmem:[%s173 + $0xf8] sm:$0xff]
      %v805 = vld [vmem:[%s173 + $0x100] sm:$0xff]
      %v806 = vld [vmem:[%s173 + $0x108] sm:$0xff]
      %v807 = vld [vmem:[%s173 + $0x110] sm:$0xff]
      %v808 = vld [vmem:[%s173 + $0x118] sm:$0xff]
      %s809 = scalar_lea.vmem %s1, 32
      %v810 = vld [vmem:[%s809] sm:$0xff]
      %v811 = vld [vmem:[%s809 + $0x8] sm:$0xff]
      %v813 = vsel %vm224, %v777, 0
      %v816 = vsel %vm224, %v778, 0
      %v819 = vsel %vm224, %v779, 0
      %v822 = vsel %vm224, %v780, 0
      %v825 = vsel %vm224, %v781, 0
      %v828 = vsel %vm224, %v782, 0
      %v831 = vsel %vm224, %v783, 0
      %v834 = vsel %vm224, %v784, 0
      %v837 = vsel %vm224, %v785, 0
      %v840 = vsel %vm224, %v786, 0
      %v843 = vsel %vm224, %v787, 0
      %v846 = vsel %vm224, %v788, 0
      %v849 = vsel %vm224, %v789, 0
      %v852 = vsel %vm224, %v790, 0
      %v855 = vsel %vm224, %v791, 0
      %v858 = vsel %vm224, %v792, 0
      %v861 = vsel %vm224, %v793, 0
      %v864 = vsel %vm224, %v794, 0
      %v867 = vsel %vm224, %v795, 0
      %v870 = vsel %vm224, %v796, 0
      %v873 = vsel %vm224, %v797, 0
      %v876 = vsel %vm224, %v798, 0
      %v879 = vsel %vm224, %v799, 0
      %v882 = vsel %vm224, %v800, 0
      %v885 = vsel %vm224, %v801, 0
      %v888 = vsel %vm224, %v802, 0
      %v891 = vsel %vm224, %v803, 0
      %v894 = vsel %vm224, %v804, 0
      %v897 = vsel %vm224, %v805, 0
      %v900 = vsel %vm224, %v806, 0
      %v903 = vsel %vm224, %v807, 0
      %v906 = vsel %vm224, %v808, 0
      %908 = vmatprep.subr.mxu0 0.0
      %909 = vmatpush1.msra.mxu0 %v810
      %910 = vmatprep.subr.mxu0 0.0
      %911 = vmatpush1.msra.mxu0 %v811
      %912 = vmatprep.subr.mxu0 0.0
      %913 = vmatpush1.msra.mxu0 0.0
      %914 = vmatprep.subr.mxu0 0.0
      %915 = vmatpush1.msra.mxu0 0.0
      %916 = vmatprep.subr.mxu0 0.0
      %917 = vmatpush1.msra.mxu0 0.0
      %918 = vmatprep.subr.mxu0 0.0
      %919 = vmatpush1.msra.mxu0 0.0
      %920 = vmatprep.subr.mxu0 0.0
      %921 = vmatpush1.msra.mxu0 0.0
      %922 = vmatprep.subr.mxu0 0.0
      %923 = vmatpush1.msra.mxu0 0.0
      %924 = vmatprep.subr.mxu0 0.0
      %925 = vmatpush1.msra.mxu0 0.0
      %926 = vmatprep.subr.mxu0 0.0
      %927 = vmatpush1.msra.mxu0 0.0
      %928 = vmatprep.subr.mxu0 0.0
      %929 = vmatpush1.msra.mxu0 0.0
      %930 = vmatprep.subr.mxu0 0.0
      %931 = vmatpush1.msra.mxu0 0.0
      %932 = vmatprep.subr.mxu0 0.0
      %933 = vmatpush1.msra.mxu0 0.0
      %934 = vmatprep.subr.mxu0 0.0
      %935 = vmatpush1.msra.mxu0 0.0
      %936 = vmatprep.subr.mxu0 0.0
      %937 = vmatpush1.msra.mxu0 0.0
      %938 = vmatprep.subr.mxu0 0.0
      %939 = vmatpush1.msra.mxu0 0.0
      %940 = vmatprep.subr.mxu0 0.0
      %941 = vmatpush1.msra.mxu0 0.0
      %942 = vmatprep.subr.mxu0 0.0
      %943 = vmatpush1.msra.mxu0 0.0
      %944 = vmatprep.subr.mxu0 0.0
      %945 = vmatpush1.msra.mxu0 0.0
      %946 = vmatprep.subr.mxu0 0.0
      %947 = vmatpush1.msra.mxu0 0.0
      %948 = vmatprep.subr.mxu0 0.0
      %949 = vmatpush1.msra.mxu0 0.0
      %950 = vmatprep.subr.mxu0 0.0
      %951 = vmatpush1.msra.mxu0 0.0
      %952 = vmatprep.subr.mxu0 0.0
      %953 = vmatpush1.msra.mxu0 0.0
      %954 = vmatprep.subr.mxu0 0.0
      %955 = vmatpush1.msra.mxu0 0.0
      %956 = vmatprep.subr.mxu0 0.0
      %957 = vmatpush1.msra.mxu0 0.0
      %958 = vmatprep.subr.mxu0 0.0
      %959 = vmatpush1.msra.mxu0 0.0
      %960 = vmatprep.subr.mxu0 0.0
      %961 = vmatpush1.msra.mxu0 0.0
      %962 = vmatprep.subr.mxu0 0.0
      %963 = vmatpush1.msra.mxu0 0.0
      %964 = vmatprep.subr.mxu0 0.0
      %965 = vmatpush1.msra.mxu0 0.0
      %966 = vmatprep.subr.mxu0 0.0
      %967 = vmatpush1.msra.mxu0 0.0
      %968 = vmatprep.subr.mxu0 0.0
      %969 = vmatpush1.msra.mxu0 0.0
      %970 = vmatprep.subr.mxu0 0.0
      %971 = vmatpush1.msra.mxu0 0.0
      %972 = vmatprep.mubr.f32.mxu0 0.0
      %973 = vmatmul.mubr.f32.gmra.mrb[0].mxu0 %v813
      %v974 = vpop.f32.mrb[0].mxu0
      %v975 = vadd.f32 0.0, %v974
      %v976 = vpop.f32.mrb[0].mxu0
      %977 = vmatprep.mubr.f32.mxu0 0.0
      %978 = vmatmul.mubr.f32.gmra.mrb[0].mxu0 %v816
      %v979 = vpop.f32.mrb[0].mxu0
      %v980 = vadd.f32 0.0, %v979
      %v981 = vpop.f32.mrb[0].mxu0
      %982 = vmatprep.mubr.f32.mxu0 0.0
      %983 = vmatmul.mubr.f32.gmra.mrb[0].mxu0 %v819
      %v984 = vpop.f32.mrb[0].mxu0
      %v985 = vadd.f32 0.0, %v984
      %v986 = vpop.f32.mrb[0].mxu0
      %987 = vmatprep.mubr.f32.mxu0 0.0
      %988 = vmatmul.mubr.f32.gmra.mrb[0].mxu0 %v822
      %v989 = vpop.f32.mrb[0].mxu0
      %v990 = vadd.f32 0.0, %v989
      %v991 = vpop.f32.mrb[0].mxu0
      %992 = vmatprep.mubr.f32.mxu0 0.0
      %993 = vmatmul.mubr.f32.gmra.mrb[0].mxu0 %v825
      %v994 = vpop.f32.mrb[0].mxu0
      %v995 = vadd.f32 0.0, %v994
      %v996 = vpop.f32.mrb[0].mxu0
      %997 = vmatprep.mubr.f32.mxu0 0.0
      %998 = vmatmul.mubr.f32.gmra.mrb[0].mxu0 %v828
      %v999 = vpop.f32.mrb[0].mxu0
      %v1000 = vadd.f32 0.0, %v999
      %v1001 = vpop.f32.mrb[0].mxu0
      %1002 = vmatprep.mubr.f32.mxu0 0.0
      %1003 = vmatmul.mubr.f32.gmra.mrb[0].mxu0 %v831
      %v1004 = vpop.f32.mrb[0].mxu0
      %v1005 = vadd.f32 0.0, %v1004
      %v1006 = vpop.f32.mrb[0].mxu0
      %1007 = vmatprep.mubr.f32.mxu0 0.0
      %1008 = vmatmul.mubr.f32.gmra.mrb[0].mxu0 %v834
      %v1009 = vpop.f32.mrb[0].mxu0
      %v1010 = vadd.f32 0.0, %v1009
      %v1011 = vpop.f32.mrb[0].mxu0
      %1012 = vmatprep.mubr.f32.mxu0 0.0
      %1013 = vmatmul.mubr.f32.gmra.mrb[0].mxu0 %v837
      %v1014 = vpop.f32.mrb[0].mxu0
      %v1015 = vadd.f32 0.0, %v1014
      %v1016 = vpop.f32.mrb[0].mxu0
      %1017 = vmatprep.mubr.f32.mxu0 0.0
      %1018 = vmatmul.mubr.f32.gmra.mrb[0].mxu0 %v840
      %v1019 = vpop.f32.mrb[0].mxu0
      %v1020 = vadd.f32 0.0, %v1019
      %v1021 = vpop.f32.mrb[0].mxu0
      %1022 = vmatprep.mubr.f32.mxu0 0.0
      %1023 = vmatmul.mubr.f32.gmra.mrb[0].mxu0 %v843
      %v1024 = vpop.f32.mrb[0].mxu0
      %v1025 = vadd.f32 0.0, %v1024
      %v1026 = vpop.f32.mrb[0].mxu0
      %1027 = vmatprep.mubr.f32.mxu0 0.0
      %1028 = vmatmul.mubr.f32.gmra.mrb[0].mxu0 %v846
      %v1029 = vpop.f32.mrb[0].mxu0
      %v1030 = vadd.f32 0.0, %v1029
      %v1031 = vpop.f32.mrb[0].mxu0
      %1032 = vmatprep.mubr.f32.mxu0 0.0
      %1033 = vmatmul.mubr.f32.gmra.mrb[0].mxu0 %v849
      %v1034 = vpop.f32.mrb[0].mxu0
      %v1035 = vadd.f32 0.0, %v1034
      %v1036 = vpop.f32.mrb[0].mxu0
      %1037 = vmatprep.mubr.f32.mxu0 0.0
      %1038 = vmatmul.mubr.f32.gmra.mrb[0].mxu0 %v852
      %v1039 = vpop.f32.mrb[0].mxu0
      %v1040 = vadd.f32 0.0, %v1039
      %v1041 = vpop.f32.mrb[0].mxu0
      %1042 = vmatprep.mubr.f32.mxu0 0.0
      %1043 = vmatmul.mubr.f32.gmra.mrb[0].mxu0 %v855
      %v1044 = vpop.f32.mrb[0].mxu0
      %v1045 = vadd.f32 0.0, %v1044
      %v1046 = vpop.f32.mrb[0].mxu0
      %1047 = vmatprep.mubr.f32.mxu0 0.0
      %1048 = vmatmul.mubr.f32.gmra.mrb[0].mxu0 %v858
      %v1049 = vpop.f32.mrb[0].mxu0
      %v1050 = vadd.f32 0.0, %v1049
      %v1051 = vpop.f32.mrb[0].mxu0
      %1052 = vmatprep.mubr.f32.mxu0 0.0
      %1053 = vmatmul.mubr.f32.gmra.mrb[0].mxu0 %v861
      %v1054 = vpop.f32.mrb[0].mxu0
      %v1055 = vadd.f32 0.0, %v1054
      %v1056 = vpop.f32.mrb[0].mxu0
      %1057 = vmatprep.mubr.f32.mxu0 0.0
      %1058 = vmatmul.mubr.f32.gmra.mrb[0].mxu0 %v864
      %v1059 = vpop.f32.mrb[0].mxu0
      %v1060 = vadd.f32 0.0, %v1059
      %v1061 = vpop.f32.mrb[0].mxu0
      %1062 = vmatprep.mubr.f32.mxu0 0.0
      %1063 = vmatmul.mubr.f32.gmra.mrb[0].mxu0 %v867
      %v1064 = vpop.f32.mrb[0].mxu0
      %v1065 = vadd.f32 0.0, %v1064
      %v1066 = vpop.f32.mrb[0].mxu0
      %1067 = vmatprep.mubr.f32.mxu0 0.0
      %1068 = vmatmul.mubr.f32.gmra.mrb[0].mxu0 %v870
      %v1069 = vpop.f32.mrb[0].mxu0
      %v1070 = vadd.f32 0.0, %v1069
      %v1071 = vpop.f32.mrb[0].mxu0
      %1072 = vmatprep.mubr.f32.mxu0 0.0
      %1073 = vmatmul.mubr.f32.gmra.mrb[0].mxu0 %v873
      %v1074 = vpop.f32.mrb[0].mxu0
      %v1075 = vadd.f32 0.0, %v1074
      %v1076 = vpop.f32.mrb[0].mxu0
      %1077 = vmatprep.mubr.f32.mxu0 0.0
      %1078 = vmatmul.mubr.f32.gmra.mrb[0].mxu0 %v876
      %v1079 = vpop.f32.mrb[0].mxu0
      %v1080 = vadd.f32 0.0, %v1079
      %v1081 = vpop.f32.mrb[0].mxu0
      %1082 = vmatprep.mubr.f32.mxu0 0.0
      %1083 = vmatmul.mubr.f32.gmra.mrb[0].mxu0 %v879
      %v1084 = vpop.f32.mrb[0].mxu0
      %v1085 = vadd.f32 0.0, %v1084
      %v1086 = vpop.f32.mrb[0].mxu0
      %1087 = vmatprep.mubr.f32.mxu0 0.0
      %1088 = vmatmul.mubr.f32.gmra.mrb[0].mxu0 %v882
      %v1089 = vpop.f32.mrb[0].mxu0
      %v1090 = vadd.f32 0.0, %v1089
      %v1091 = vpop.f32.mrb[0].mxu0
      %1092 = vmatprep.mubr.f32.mxu0 0.0
      %1093 = vmatmul.mubr.f32.gmra.mrb[0].mxu0 %v885
      %v1094 = vpop.f32.mrb[0].mxu0
      %v1095 = vadd.f32 0.0, %v1094
      %v1096 = vpop.f32.mrb[0].mxu0
      %1097 = vmatprep.mubr.f32.mxu0 0.0
      %1098 = vmatmul.mubr.f32.gmra.mrb[0].mxu0 %v888
      %v1099 = vpop.f32.mrb[0].mxu0
      %v1100 = vadd.f32 0.0, %v1099
      %v1101 = vpop.f32.mrb[0].mxu0
      %1102 = vmatprep.mubr.f32.mxu0 0.0
      %1103 = vmatmul.mubr.f32.gmra.mrb[0].mxu0 %v891
      %v1104 = vpop.f32.mrb[0].mxu0
      %v1105 = vadd.f32 0.0, %v1104
      %v1106 = vpop.f32.mrb[0].mxu0
      %1107 = vmatprep.mubr.f32.mxu0 0.0
      %1108 = vmatmul.mubr.f32.gmra.mrb[0].mxu0 %v894
      %v1109 = vpop.f32.mrb[0].mxu0
      %v1110 = vadd.f32 0.0, %v1109
      %v1111 = vpop.f32.mrb[0].mxu0
      %1112 = vmatprep.mubr.f32.mxu0 0.0
      %1113 = vmatmul.mubr.f32.gmra.mrb[0].mxu0 %v897
      %v1114 = vpop.f32.mrb[0].mxu0
      %v1115 = vadd.f32 0.0, %v1114
      %v1116 = vpop.f32.mrb[0].mxu0
      %1117 = vmatprep.mubr.f32.mxu0 0.0
      %1118 = vmatmul.mubr.f32.gmra.mrb[0].mxu0 %v900
      %v1119 = vpop.f32.mrb[0].mxu0
      %v1120 = vadd.f32 0.0, %v1119
      %v1121 = vpop.f32.mrb[0].mxu0
      %1122 = vmatprep.mubr.f32.mxu0 0.0
      %1123 = vmatmul.mubr.f32.gmra.mrb[0].mxu0 %v903
      %v1124 = vpop.f32.mrb[0].mxu0
      %v1125 = vadd.f32 0.0, %v1124
      %v1126 = vpop.f32.mrb[0].mxu0
      %1127 = vmatprep.mubr.f32.mxu0 0.0
      %1128 = vmatmul.mubr.f32.gmra.mrb[0].mxu0 %v906
      %v1129 = vpop.f32.mrb[0].mxu0
      %v1130 = vadd.f32 0.0, %v1129
      %v1131 = vpop.f32.mrb[0].mxu0
      %1132 = vdwg.mxu0
      %v1133 = vadd.f32 %v619, %v975
      %v1134 = vadd.f32 %v624, %v980
      %v1135 = vadd.f32 %v629, %v985
      %v1136 = vadd.f32 %v634, %v990
      %v1137 = vadd.f32 %v639, %v995
      %v1138 = vadd.f32 %v644, %v1000
      %v1139 = vadd.f32 %v649, %v1005
      %v1140 = vadd.f32 %v654, %v1010
      %v1141 = vadd.f32 %v659, %v1015
      %v1142 = vadd.f32 %v664, %v1020
      %v1143 = vadd.f32 %v669, %v1025
      %v1144 = vadd.f32 %v674, %v1030
      %v1145 = vadd.f32 %v679, %v1035
      %v1146 = vadd.f32 %v684, %v1040
      %v1147 = vadd.f32 %v689, %v1045
      %v1148 = vadd.f32 %v694, %v1050
      %v1149 = vadd.f32 %v699, %v1055
      %v1150 = vadd.f32 %v704, %v1060
      %v1151 = vadd.f32 %v709, %v1065
      %v1152 = vadd.f32 %v714, %v1070
      %v1153 = vadd.f32 %v719, %v1075
      %v1154 = vadd.f32 %v724, %v1080
      %v1155 = vadd.f32 %v729, %v1085
      %v1156 = vadd.f32 %v734, %v1090
      %v1157 = vadd.f32 %v739, %v1095
      %v1158 = vadd.f32 %v744, %v1100
      %v1159 = vadd.f32 %v749, %v1105
      %v1160 = vadd.f32 %v754, %v1110
      %v1161 = vadd.f32 %v759, %v1115
      %v1162 = vadd.f32 %v764, %v1120
      %v1163 = vadd.f32 %v769, %v1125
      %v1164 = vadd.f32 %v774, %v1130
      %1165 = vst [vmem:[%s179] sm:$0xff] %v1133
      %1166 = vst [vmem:[%s179 + $0x8] sm:$0xff] %v1134
      %1167 = vst [vmem:[%s179 + $0x10] sm:$0xff] %v1135
      %1168 = vst [vmem:[%s179 + $0x18] sm:$0xff] %v1136
      %1169 = vst [vmem:[%s179 + $0x20] sm:$0xff] %v1137
      %1170 = vst [vmem:[%s179 + $0x28] sm:$0xff] %v1138
      %1171 = vst [vmem:[%s179 + $0x30] sm:$0xff] %v1139
      %1172 = vst [vmem:[%s179 + $0x38] sm:$0xff] %v1140
      %1173 = vst [vmem:[%s179 + $0x40] sm:$0xff] %v1141
      %1174 = vst [vmem:[%s179 + $0x48] sm:$0xff] %v1142
      %1175 = vst [vmem:[%s179 + $0x50] sm:$0xff] %v1143
      %1176 = vst [vmem:[%s179 + $0x58] sm:$0xff] %v1144
      %1177 = vst [vmem:[%s179 + $0x60] sm:$0xff] %v1145
      %1178 = vst [vmem:[%s179 + $0x68] sm:$0xff] %v1146
      %1179 = vst [vmem:[%s179 + $0x70] sm:$0xff] %v1147
      %1180 = vst [vmem:[%s179 + $0x78] sm:$0xff] %v1148
      %1181 = vst [vmem:[%s179 + $0x80] sm:$0xff] %v1149
      %1182 = vst [vmem:[%s179 + $0x88] sm:$0xff] %v1150
      %1183 = vst [vmem:[%s179 + $0x90] sm:$0xff] %v1151
      %1184 = vst [vmem:[%s179 + $0x98] sm:$0xff] %v1152
      %1185 = vst [vmem:[%s179 + $0xa0] sm:$0xff] %v1153
      %1186 = vst [vmem:[%s179 + $0xa8] sm:$0xff] %v1154
      %1187 = vst [vmem:[%s179 + $0xb0] sm:$0xff] %v1155
      %1188 = vst [vmem:[%s179 + $0xb8] sm:$0xff] %v1156
      %1189 = vst [vmem:[%s179 + $0xc0] sm:$0xff] %v1157
      %1190 = vst [vmem:[%s179 + $0xc8] sm:$0xff] %v1158
      %1191 = vst [vmem:[%s179 + $0xd0] sm:$0xff] %v1159
      %1192 = vst [vmem:[%s179 + $0xd8] sm:$0xff] %v1160
      %1193 = vst [vmem:[%s179 + $0xe0] sm:$0xff] %v1161
      %1194 = vst [vmem:[%s179 + $0xe8] sm:$0xff] %v1162
      %1195 = vst [vmem:[%s179 + $0xf0] sm:$0xff] %v1163
      %1196 = vst [vmem:[%s179 + $0xf8] sm:$0xff] %v1164
      %v1197 = vadd.f32 %v1133, %v1134
      %v1198 = vadd.f32 %v1197, %v1135
      %v1199 = vadd.f32 %v1198, %v1136
      %v1200 = vadd.f32 %v1199, %v1137
      %v1201 = vadd.f32 %v1200, %v1138
      %v1202 = vadd.f32 %v1201, %v1139
      %v1203 = vadd.f32 %v1202, %v1140
      %v1204 = vadd.f32 %v1203, %v1141
      %v1205 = vadd.f32 %v1204, %v1142
      %v1206 = vadd.f32 %v1205, %v1143
      %v1207 = vadd.f32 %v1206, %v1144
      %v1208 = vadd.f32 %v1207, %v1145
      %v1209 = vadd.f32 %v1208, %v1146
      %v1210 = vadd.f32 %v1209, %v1147
      %v1211 = vadd.f32 %v1210, %v1148
      %v1212 = vadd.f32 %v1211, %v1149
      %v1213 = vadd.f32 %v1212, %v1150
      %v1214 = vadd.f32 %v1213, %v1151
      %v1215 = vadd.f32 %v1214, %v1152
      %v1216 = vadd.f32 %v1215, %v1153
      %v1217 = vadd.f32 %v1216, %v1154
      %v1218 = vadd.f32 %v1217, %v1155
      %v1219 = vadd.f32 %v1218, %v1156
      %v1220 = vadd.f32 %v1219, %v1157
      %v1221 = vadd.f32 %v1220, %v1158
      %v1222 = vadd.f32 %v1221, %v1159
      %v1223 = vadd.f32 %v1222, %v1160
      %v1224 = vadd.f32 %v1223, %v1161
      %v1225 = vadd.f32 %v1224, %v1162
      %v1226 = vadd.f32 %v1225, %v1163
      %v1227 = vadd.f32 %v1226, %v1164
      %v1228 = vrot.slane %v1227, 4
      %v1229 = vadd.f32 %v1227, %v1228
      %v1230 = vrot.slane %v1229, 2
      %v1231 = vadd.f32 %v1229, %v1230
      %v1232 = vrot.slane %v1231, 1
      %v1233 = vadd.f32 %v1231, %v1232
      %v1234 = vmul.f32 %v1233, 0.00390625
      %v1235 = vsub.f32 %v1133, %v1234
      %v1236 = vsub.f32 %v1134, %v1234
      %v1237 = vsub.f32 %v1135, %v1234
      %v1238 = vsub.f32 %v1136, %v1234
      %v1239 = vsub.f32 %v1137, %v1234
      %v1240 = vsub.f32 %v1138, %v1234
      %v1241 = vsub.f32 %v1139, %v1234
      %v1242 = vsub.f32 %v1140, %v1234
      %v1243 = vsub.f32 %v1141, %v1234
      %v1244 = vsub.f32 %v1142, %v1234
      %v1245 = vsub.f32 %v1143, %v1234
      %v1246 = vsub.f32 %v1144, %v1234
      %v1247 = vsub.f32 %v1145, %v1234
      %v1248 = vsub.f32 %v1146, %v1234
      %v1249 = vsub.f32 %v1147, %v1234
      %v1250 = vsub.f32 %v1148, %v1234
      %v1251 = vsub.f32 %v1149, %v1234
      %v1252 = vsub.f32 %v1150, %v1234
      %v1253 = vsub.f32 %v1151, %v1234
      %v1254 = vsub.f32 %v1152, %v1234
      %v1255 = vsub.f32 %v1153, %v1234
      %v1256 = vsub.f32 %v1154, %v1234
      %v1257 = vsub.f32 %v1155, %v1234
      %v1258 = vsub.f32 %v1156, %v1234
      %v1259 = vsub.f32 %v1157, %v1234
      %v1260 = vsub.f32 %v1158, %v1234
      %v1261 = vsub.f32 %v1159, %v1234
      %v1262 = vsub.f32 %v1160, %v1234
      %v1263 = vsub.f32 %v1161, %v1234
      %v1264 = vsub.f32 %v1162, %v1234
      %v1265 = vsub.f32 %v1163, %v1234
      %v1266 = vsub.f32 %v1164, %v1234
      %v1267 = vmul.f32 %v1235, %v1235
      %v1268 = vmul.f32 %v1236, %v1236
      %v1269 = vmul.f32 %v1237, %v1237
      %v1270 = vmul.f32 %v1238, %v1238
      %v1271 = vmul.f32 %v1239, %v1239
      %v1272 = vmul.f32 %v1240, %v1240
      %v1273 = vmul.f32 %v1241, %v1241
      %v1274 = vmul.f32 %v1242, %v1242
      %v1275 = vmul.f32 %v1243, %v1243
      %v1276 = vmul.f32 %v1244, %v1244
      %v1277 = vmul.f32 %v1245, %v1245
      %v1278 = vmul.f32 %v1246, %v1246
      %v1279 = vmul.f32 %v1247, %v1247
      %v1280 = vmul.f32 %v1248, %v1248
      %v1281 = vmul.f32 %v1249, %v1249
      %v1282 = vmul.f32 %v1250, %v1250
      %v1283 = vmul.f32 %v1251, %v1251
      %v1284 = vmul.f32 %v1252, %v1252
      %v1285 = vmul.f32 %v1253, %v1253
      %v1286 = vmul.f32 %v1254, %v1254
      %v1287 = vmul.f32 %v1255, %v1255
      %v1288 = vmul.f32 %v1256, %v1256
      %v1289 = vmul.f32 %v1257, %v1257
      %v1290 = vmul.f32 %v1258, %v1258
      %v1291 = vmul.f32 %v1259, %v1259
      %v1292 = vmul.f32 %v1260, %v1260
      %v1293 = vmul.f32 %v1261, %v1261
      %v1294 = vmul.f32 %v1262, %v1262
      %v1295 = vmul.f32 %v1263, %v1263
      %v1296 = vmul.f32 %v1264, %v1264
      %v1297 = vmul.f32 %v1265, %v1265
      %v1298 = vmul.f32 %v1266, %v1266
      %v1299 = vadd.f32 %v1267, %v1268
      %v1300 = vadd.f32 %v1299, %v1269
      %v1301 = vadd.f32 %v1300, %v1270
      %v1302 = vadd.f32 %v1301, %v1271
      %v1303 = vadd.f32 %v1302, %v1272
      %v1304 = vadd.f32 %v1303, %v1273
      %v1305 = vadd.f32 %v1304, %v1274
      %v1306 = vadd.f32 %v1305, %v1275
      %v1307 = vadd.f32 %v1306, %v1276
      %v1308 = vadd.f32 %v1307, %v1277
      %v1309 = vadd.f32 %v1308, %v1278
      %v1310 = vadd.f32 %v1309, %v1279
      %v1311 = vadd.f32 %v1310, %v1280
      %v1312 = vadd.f32 %v1311, %v1281
      %v1313 = vadd.f32 %v1312, %v1282
      %v1314 = vadd.f32 %v1313, %v1283
      %v1315 = vadd.f32 %v1314, %v1284
      %v1316 = vadd.f32 %v1315, %v1285
      %v1317 = vadd.f32 %v1316, %v1286
      %v1318 = vadd.f32 %v1317, %v1287
      %v1319 = vadd.f32 %v1318, %v1288
      %v1320 = vadd.f32 %v1319, %v1289
      %v1321 = vadd.f32 %v1320, %v1290
      %v1322 = vadd.f32 %v1321, %v1291
      %v1323 = vadd.f32 %v1322, %v1292
      %v1324 = vadd.f32 %v1323, %v1293
      %v1325 = vadd.f32 %v1324, %v1294
      %v1326 = vadd.f32 %v1325, %v1295
      %v1327 = vadd.f32 %v1326, %v1296
      %v1328 = vadd.f32 %v1327, %v1297
      %v1329 = vadd.f32 %v1328, %v1298
      %v1330 = vrot.slane %v1329, 4
      %v1331 = vadd.f32 %v1329, %v1330
      %v1332 = vrot.slane %v1331, 2
      %v1333 = vadd.f32 %v1331, %v1332
      %v1334 = vrot.slane %v1333, 1
      %v1335 = vadd.f32 %v1333, %v1334
      %vm1336 = vcmask 1040384
      %v1337 = vsel %vm1336, %v1234, %v1335
      %1338 = vst [vmem:[%s184] sm:$0x3] %v1337
      %s1339 = smul.u32 32, %s15
      %p1340 = scmp.lt.s32.totalorder %s1339, 63
      %s1341 = scalar_select %p1340, %s1339, 63
      %s1342 = smul.addr %s1341, 8
      %s1343 = scalar_lea.vmem %s2, %s1342
      %p1344 = scmp.lt.s32.totalorder %s15, 1
      %s1345 = scalar_select %p1344, %s15, 1
      %s1346 = smul.addr %s1345, 2
      %s1347 = scalar_lea.vmem %s3, %s1346
      // Predicated region
      $region29: #{conv_bn_relu_pool.2} parent=27 // pred_check
        %p1348 = pneg %p80
      $region30: #{conv_bn_relu_pool.2} parent=27 // pred_check_branch
        %1350 = sbr.rel (%p1348) target = $region32
      $region31: #{conv_bn_relu_pool.2} parent=27 // pred_region
        %s1351 = smul.u32 32, %s15
      $region32: #{conv_bn_relu_pool.2} parent=27 // pred_fallthru
        _
      // Predicated region
      $region33: #{conv_bn_relu_pool.2} parent=27 // pred_check
        %p1352 = pneg %p106
      $region34: #{conv_bn_relu_pool.2} parent=27 // pred_check_branch
        %1354 = sbr.rel (%p1352) target = $region36
      $region35: #{conv_bn_relu_pool.2} parent=27 // pred_region
        _
      $region36: #{conv_bn_relu_pool.2} parent=27 // pred_fallthru
        _
    $region28: #{conv_bn_relu_pool.2} parent=5 // pred_fallthru
      _
    %p1355 = scmp.le.s32.totalorder 2, %s10
    // Predicated region
    $region37: #{conv_bn_relu_pool.2} parent=5 // pred_check
      %p1356 = pneg %p1355
    $region38: #{conv_bn_relu_pool.2} parent=5 // pred_check_branch
      %1358 = sbr.rel (%p1356) target = $region40
    $region39: #{conv_bn_relu_pool.2} parent=5 // pred_region
      %s1359 = ssub.s32 %s10, 2
      // Predicated region
      $region41: #{conv_bn_relu_pool.2} parent=39 // pred_check
        %p1360 = pneg %p86
      $region42: #{conv_bn_relu_pool.2} parent=39 // pred_check_branch
        %1362 = sbr.rel (%p1360) target = $region44
      $region43: #{conv_bn_relu_pool.2} parent=39 // pred_region
        %s1363 = smul.u32 32, %s16
        %p1364 = scmp.lt.s32.totalorder %s1363, 63
        %s1365 = scalar_select %p1364, %s1363, 63
        %s1366 = smul.addr %s1365, 8
        %s1367 = scalar_lea.vmem %s2, %s1366
      $region44: #{conv_bn_relu_pool.2} parent=39 // pred_fallthru
        _
      // Predicated region
      $region45: #{conv_bn_relu_pool.2} parent=39 // pred_check
        %p1368 = pneg %p112
      $region46: #{conv_bn_relu_pool.2} parent=39 // pred_check_branch
        %1370 = sbr.rel (%p1368) target = $region48
      $region47: #{conv_bn_relu_pool.2} parent=39 // pred_region
        %p1371 = scmp.lt.s32.totalorder %s16, 1
        %s1372 = scalar_select %p1371, %s16, 1
        %s1373 = smul.addr %s1372, 2
        %s1374 = scalar_lea.vmem %s3, %s1373
      $region48: #{conv_bn_relu_pool.2} parent=39 // pred_fallthru
        _
    $region40: #{conv_bn_relu_pool.2} parent=5 // pred_fallthru
      _
  $region6: #{conv_bn_relu_pool.2} parent=0 // loop_footer
    %s14 = sadd.s32 1, %s10
  $region7: #{conv_bn_relu_pool.2} parent=0 // loop_footer_branch
    %9 = sbr.rel target = $region3
  $region8: #{conv_bn_relu_pool.2} parent=0 // loop_exit
    _

</llo_original>
